<compile_context>
chip_gen: v5e
topology: v5e:2x2
jax: 0.10.0
libtpu: 0.0.40
codegen_flags: <defaults>
</compile_context>

<pallas_src>
import functools
from math import sqrt

import jax
import jax.numpy as jnp
import numpy as np
from jax.experimental import pallas as pl
from jax.experimental.pallas import tpu as pltpu

EPS = 1e-5
INV_SQRT2 = 0.7071067811865476


def _erf(x):
    # Abramowitz & Stegun 7.1.26 (|err| <= 1.5e-7), built only from
    # exp/mul/add/where so it lowers cleanly in Mosaic (no reliance on an
    # erf primitive lowering).
    a1, a2, a3, a4, a5 = (0.254829592, -0.284496736, 1.421413741,
                          -1.453152027, 1.061405429)
    p = 0.3275911
    ax = jnp.abs(x)
    t = 1.0 / (1.0 + p * ax)
    poly = ((((a5 * t + a4) * t + a3) * t + a2) * t + a1) * t
    y = 1.0 - poly * jnp.exp(-ax * ax)
    return jnp.where(x < 0.0, -y, y)


def _erf_gelu(x):
    # exact GELU (torch.nn.functional.gelu default, approximate='none')
    return 0.5 * x * (1.0 + _erf(x * INV_SQRT2))


def slstm_seq_kernel(
    # inputs
    seq_ref, state_in_ref,
    ln_g_ref, ln_b_ref,
    wg_ref, rg_ref, bg_ref,
    gn_g_ref, gn_b_ref, g_ref, gt_ref,
    up_ref, upb_ref, dn_ref, dnb_ref,
    # outputs
    out_ref, state_out_ref,
    # scratch
    carry_ref,
    *, hid, head_num, head_dim, proj_pad,
):
    f32 = jnp.float32
    bf16 = jnp.bfloat16
    dot = lambda a, b: jnp.dot(a, b, preferred_element_type=f32)

    t = pl.program_id(0)

    # ---- initialize the VMEM-resident state carry on the first step ----
    @pl.when(t == 0)
    def _():
        carry_ref[...] = state_in_ref[...]

    c_tm1 = carry_ref[:, 0 * hid:1 * hid]
    n_tm1 = carry_ref[:, 1 * hid:2 * hid]
    h_tm1 = carry_ref[:, 2 * hid:3 * hid]
    m_tm1 = carry_ref[:, 3 * hid:4 * hid]

    seq = seq_ref[...]                                        # (bp, inp_dim)

    # ---- LayerNorm over input features (inp_norm) ----
    mu = jnp.mean(seq, axis=-1, keepdims=True)
    var = jnp.mean((seq - mu) ** 2, axis=-1, keepdims=True)
    x_t = (seq - mu) * jax.lax.rsqrt(var + EPS) * ln_g_ref[...] + ln_b_ref[...]
    # use_conv=False (module default): x_c == x_t
    # TODO(synk): causal_conv + silu (use_conv=True branch) not implemented.

    # ---- fused gate projections [i | f | z | o]: two wide MXU pushes ----
    # TODO(synk): at head_dim >= 128 pass Rg as per-head (head_num, hd, 4*hd)
    # blocks and do a per-head batched matmul instead of dense block-diagonal.
    gates = (dot(x_t.astype(bf16), wg_ref[...])
             + dot(h_tm1.astype(bf16), rg_ref[...])
             + bg_ref[...])                                   # (bp, 4*hid) f32
    i_t = gates[:, 0 * hid:1 * hid]
    f_t = gates[:, 1 * hid:2 * hid]
    z_t = gates[:, 2 * hid:3 * hid]
    o_t = gates[:, 3 * hid:4 * hid]

    # ---- stabilized sLSTM cell update (f32 elementwise / EUP) ----
    m_t = jnp.maximum(f_t + m_tm1, i_t)
    i_e = jnp.exp(i_t - m_t)
    f_e = jnp.exp(f_t - m_t + m_tm1)
    z_a = jnp.tanh(z_t)
    o_a = jax.nn.sigmoid(o_t)

    c_t = f_e * c_tm1 + i_e * z_a
    n_t = f_e * n_tm1 + i_e
    # exact divide: h_t is recurrent state; approx-reciprocal error would
    # compound across the T grid steps.
    h_t = o_a * (c_t / n_t)

    # ---- GroupNorm(head_num groups), two-pass variance ----
    if head_dim % 128 == 0:
        # lane-aligned per-head XLU reductions
        bp = h_t.shape[0]
        hg = h_t.reshape(bp, head_num, head_dim)
        gm = jnp.mean(hg, axis=-1, keepdims=True)
        gv = jnp.mean((hg - gm) ** 2, axis=-1, keepdims=True)
        hn = ((hg - gm) * jax.lax.rsqrt(gv + EPS)).reshape(bp, hid)
    else:
        # small indicator matmuls: group-mean, broadcast back, group-variance
        inv_hd = 1.0 / float(head_dim)
        gmean = dot(h_t, g_ref[...]) * inv_hd                 # (bp, head_num)
        mean_full = dot(gmean, gt_ref[...])                   # (bp, hid)
        d0 = h_t - mean_full
        gvar = dot(d0 * d0, g_ref[...]) * inv_hd              # (bp, head_num)
        var_full = dot(gvar, gt_ref[...])                     # (bp, hid)
        hn = d0 * jax.lax.rsqrt(var_full + EPS)
    hn = hn * gn_g_ref[...] + gn_b_ref[...]

    # ---- up projection, GELU gate, down projection, residual ----
    # proj_dim is zero-padded to proj_pad (multiple of 128) so both halves and
    # the DnT rows are lane-tile aligned; the padding is mathematically exact.
    up = dot(hn.astype(bf16), up_ref[...]) + upb_ref[...]     # (bp, 2*proj_pad)
    out1 = up[:, :proj_pad]
    out2 = up[:, proj_pad:]
    y = out1 + _erf_gelu(out2)
    y = dot(y.astype(bf16), dn_ref[...]) + dnb_ref[...]       # (bp, inp_dim)

    out_ref[...] = y + seq

    # ---- update the VMEM state carry: direct aligned slice stores ----
    carry_ref[:, 0 * hid:1 * hid] = c_t
    carry_ref[:, 1 * hid:2 * hid] = n_t
    carry_ref[:, 2 * hid:3 * hid] = h_t
    carry_ref[:, 3 * hid:4 * hid] = m_t

    # write the packed final state to HBM only once, after the last step
    @pl.when(t == pl.num_programs(0) - 1)
    def _():
        state_out_ref[...] = carry_ref[...]


def make_params(key, inp_dim, head_dim, head_num, p_factor=4.0 / 3.0):
    """Deterministic synthetic parameter init (mirrors the module __init__)."""
    hid = head_dim * head_num
    proj_dim = int(p_factor * hid)
    proj_pad = ((proj_dim + 127) // 128) * 128        # lane-align up-proj halves
    pad = proj_pad - proj_dim

    keys = jax.random.split(key, 16)
    ki = iter(keys)

    def linear(out_dim, in_dim):
        k = 1.0 / sqrt(in_dim)
        w = jax.random.uniform(next(ki), (out_dim, in_dim), jnp.float32, -k, k)
        b = jax.random.uniform(next(ki), (out_dim,), jnp.float32, -k, k)
        return w, b

    def block_diag_recurrent():
        # BlockLinear([(head_dim, head_dim)] * head_num), no bias.
        blocks = jax.random.normal(next(ki), (head_num, head_dim, head_dim),
                                   jnp.float32) * (1.0 / sqrt(head_dim))
        full = jax.scipy.linalg.block_diag(*[blocks[h] for h in range(head_num)])
        # module applies full @ h_vec per sample -> kernel computes h @ full.T
        return full.T

    p = {}
    p["ln_g"] = jnp.ones((1, inp_dim), jnp.float32)
    p["ln_b"] = jnp.zeros((1, inp_dim), jnp.float32)

    # fused [i | f | z | o] gate weights (bf16 for the MXU, bias stays f32)
    wts, bts, rts = [], [], []
    for _ in range(4):                 # gate order: i, f, z, o
        w, b = linear(hid, inp_dim)
        wts.append(w.T)                            # (inp_dim, hid)
        bts.append(b[None, :])                     # (1, hid)
        rts.append(block_diag_recurrent())         # (hid, hid)
    p["Wg"] = jnp.concatenate(wts, axis=1).astype(jnp.bfloat16)   # (inp, 4*hid)
    p["Rg"] = jnp.concatenate(rts, axis=1).astype(jnp.bfloat16)   # (hid, 4*hid)
    p["bg"] = jnp.concatenate(bts, axis=1)                        # (1, 4*hid)

    p["gn_g"] = jnp.ones((1, hid), jnp.float32)
    p["gn_b"] = jnp.zeros((1, hid), jnp.float32)

    # GroupNorm indicator matrix (used when head_dim % 128 != 0)
    grp = jnp.repeat(jnp.eye(head_num, dtype=jnp.float32), head_dim, axis=0)
    p["G"] = grp                                   # (hid, head_num)
    p["GT"] = grp.T                                # (head_num, hid)

    # up_proj: (2*proj_dim, hid); zero-pad each proj_dim half to proj_pad cols
    up_w, up_b = linear(2 * proj_dim, hid)
    w1 = jnp.pad(up_w[:proj_dim].T, ((0, 0), (0, pad)))
    w2 = jnp.pad(up_w[proj_dim:].T, ((0, 0), (0, pad)))
    b1 = jnp.pad(up_b[:proj_dim], (0, pad))
    b2 = jnp.pad(up_b[proj_dim:], (0, pad))
    p["UpT"] = jnp.concatenate([w1, w2], axis=1).astype(jnp.bfloat16)  # (hid, 2*proj_pad)
    p["upb"] = jnp.concatenate([b1, b2])[None, :]                      # (1, 2*proj_pad)

    # down_proj: (inp_dim, proj_dim); zero-pad rows to proj_pad (exact)
    dn_w, dn_b = linear(inp_dim, proj_dim)
    p["DnT"] = jnp.pad(dn_w.T, ((0, pad), (0, 0))).astype(jnp.bfloat16)  # (proj_pad, inp)
    p["dnb"] = dn_b[None, :]                                             # (1, inp_dim)
    return p


@jax.jit
def slstm_forward_seq(seq_T, hid_state, params):
    """Run T sLSTM steps in one pallas_call (time axis = kernel grid).

    seq_T: (T, b, inp_dim); hid_state = (c, n, h, m), each (b, hid).
    Returns (out_T, (c, n, h, m)): out_T[t] is the module forward output for
    step t; the states are the final states after T steps.
    """
    T, b, d = seq_T.shape
    hid = hid_state[0].shape[-1]
    head_num = params["G"].shape[1]
    head_dim = hid // head_num
    proj_pad = params["UpT"].shape[1] // 2

    # pad batch to the f32 sublane quantum (8) -> full-sublane vregs / stores.
    # TODO(synk): with real batch > 8 on v6e/v7x, tile batch at 256 and pad the
    # bf16 matmul operands' sublane dim to 16.
    bp = max(8, ((b + 7) // 8) * 8)
    pad_b = bp - b
    seq_p = jnp.pad(seq_T, ((0, 0), (0, pad_b), (0, 0)))
    state_p = jnp.pad(jnp.concatenate(hid_state, axis=-1), ((0, pad_b), (0, 0)))

    weights = (
        params["ln_g"], params["ln_b"],
        params["Wg"], params["Rg"], params["bg"],
        params["gn_g"], params["gn_b"], params["G"], params["GT"],
        params["UpT"], params["upb"], params["DnT"], params["dnb"],
    )

    def resident(w):
        # full-array block, constant index_map -> DMA'd once, stays in VMEM
        return pl.BlockSpec(w.shape, lambda t: (0,) * w.ndim)

    grid_spec = pltpu.PrefetchScalarGridSpec(
        num_scalar_prefetch=0,
        grid=(T,),
        in_specs=[
            pl.BlockSpec((None, bp, d), lambda t: (t, 0, 0)),   # seq step t
            pl.BlockSpec((bp, 4 * hid), lambda t: (0, 0)),      # initial state
        ] + [resident(w) for w in weights],
        out_specs=(
            pl.BlockSpec((None, bp, d), lambda t: (t, 0, 0)),   # out step t
            pl.BlockSpec((bp, 4 * hid), lambda t: (0, 0)),      # final state
        ),
        scratch_shapes=[pltpu.VMEM((bp, 4 * hid), jnp.float32)],  # state carry
    )

    out_T, state_out = pl.pallas_call(
        functools.partial(slstm_seq_kernel, hid=hid, head_num=head_num,
                          head_dim=head_dim, proj_pad=proj_pad),
        out_shape=(jax.ShapeDtypeStruct((T, bp, d), jnp.float32),
                   jax.ShapeDtypeStruct((bp, 4 * hid), jnp.float32)),
        grid_spec=grid_spec,
        input_output_aliases={1: 1},          # packed state in -> packed state out
        compiler_params=pltpu.CompilerParams(
            dimension_semantics=("arbitrary",),   # time is a true recurrence
            vmem_limit_bytes=32 * 1024 * 1024,
        ),
    )(seq_p, state_p, *weights)

    out_T = out_T[:, :b, :]
    c_t = state_out[:b, 0 * hid:1 * hid]
    n_t = state_out[:b, 1 * hid:2 * hid]
    h_t = state_out[:b, 2 * hid:3 * hid]
    m_t = state_out[:b, 3 * hid:4 * hid]
    return out_T, (c_t, n_t, h_t, m_t)


def slstm_forward(seq, hid_state, params):
    """Single-step forward matching the PyTorch module's signature."""
    out_T, new_state = slstm_forward_seq(seq[None], hid_state, params)
    return out_T[0], new_state


def slstm_reference(seq, hid_state, params):
    """Pure-JAX single-step reference (module semantics, same bf16 weights)."""
    c_tm1, n_tm1, h_tm1, m_tm1 = hid_state
    hid = c_tm1.shape[-1]
    head_num = params["G"].shape[1]
    head_dim = hid // head_num
    proj_pad = params["UpT"].shape[1] // 2
    dot = lambda a, b: jnp.dot(a.astype(jnp.bfloat16), b,
                               preferred_element_type=jnp.float32)

    mu = jnp.mean(seq, axis=-1, keepdims=True)
    var = jnp.mean((seq - mu) ** 2, axis=-1, keepdims=True)
    x_t = (seq - mu) * jax.lax.rsqrt(var + EPS) * params["ln_g"] + params["ln_b"]

    gates = dot(x_t, params["Wg"]) + dot(h_tm1, params["Rg"]) + params["bg"]
    i_t = gates[:, 0 * hid:1 * hid]
    f_t = gates[:, 1 * hid:2 * hid]
    z_t = gates[:, 2 * hid:3 * hid]
    o_t = gates[:, 3 * hid:4 * hid]

    m_t = jnp.maximum(f_t + m_tm1, i_t)
    i_e = jnp.exp(i_t - m_t)
    f_e = jnp.exp(f_t - m_t + m_tm1)
    c_t = f_e * c_tm1 + i_e * jnp.tanh(z_t)
    n_t = f_e * n_tm1 + i_e
    h_t = jax.nn.sigmoid(o_t) * (c_t / n_t)

    b = seq.shape[0]
    hg = h_t.reshape(b, head_num, head_dim)
    gm = jnp.mean(hg, axis=-1, keepdims=True)
    gv = jnp.mean((hg - gm) ** 2, axis=-1, keepdims=True)
    hn = ((hg - gm) * jax.lax.rsqrt(gv + EPS)).reshape(b, -1)
    hn = hn * params["gn_g"] + params["gn_b"]

    up = dot(hn, params["UpT"]) + params["upb"]
    out1, out2 = up[:, :proj_pad], up[:, proj_pad:]
    y = out1 + _erf_gelu(out2)
    y = dot(y, params["DnT"]) + params["dnb"]
    return y + seq, (c_t, n_t, h_t, m_t)


if __name__ == "__main__":
    # small, lane-aligned shapes consistent with the module's forward:
    #   each step is (batch, inp_dim); hid = head_dim * head_num
    batch, inp_dim, head_dim, head_num, T = 2, 128, 32, 4, 6
    hid_dim = head_dim * head_num

    key = jax.random.PRNGKey(0)
    k_seq, k_h, k_par = jax.random.split(key, 3)

    seq_T = jax.random.normal(k_seq, (T, batch, inp_dim), jnp.float32)
    # init_hidden: c=0, n=1, h=0, m=0 (non-zero h so the recurrence matters)
    c0 = jnp.zeros((batch, hid_dim), jnp.float32)
    n0 = jnp.ones((batch, hid_dim), jnp.float32)
    h0 = 0.1 * jax.random.normal(k_h, (batch, hid_dim), jnp.float32)
    m0 = jnp.zeros((batch, hid_dim), jnp.float32)
    state0 = (c0, n0, h0, m0)

    params = make_params(k_par, inp_dim, head_dim, head_num)

    # --- single-step (matches the module forward signature) ---
    out1, new_state1 = slstm_forward(seq_T[0], state0, params)
    out1 = jax.block_until_ready(out1)
    new_state1 = jax.tree_util.tree_map(jax.block_until_ready, new_state1)

    ref_out1, ref_state1 = slstm_reference(seq_T[0], state0, params)
    np.testing.assert_allclose(np.asarray(out1), np.asarray(ref_out1),
                               rtol=2e-2, atol=2e-2)
    for a, bref in zip(new_state1, ref_state1):
        np.testing.assert_allclose(np.asarray(a), np.asarray(bref),
                                   rtol=2e-2, atol=2e-2)

    # --- T-step sequence (time loop inside the kernel grid) ---
    out_T, new_state_T = slstm_forward_seq(seq_T, state0, params)
    out_T = jax.block_until_ready(out_T)
    new_state_T = jax.tree_util.tree_map(jax.block_until_ready, new_state_T)

    ref_state = state0
    ref_outs = []
    for t in range(T):
        o, ref_state = slstm_reference(seq_T[t], ref_state, params)
        ref_outs.append(o)
    ref_out_T = jnp.stack(ref_outs)

    np.testing.assert_allclose(np.asarray(out_T), np.asarray(ref_out_T),
                               rtol=2e-2, atol=2e-2)
    for a, bref in zip(new_state_T, ref_state):
        np.testing.assert_allclose(np.asarray(a), np.asarray(bref),
                                   rtol=2e-2, atol=2e-2)

    print("KERNEL_OK")
</pallas_src>

<mosaic_0001>
module attributes {stable_mosaic.version = 11 : i64} {
  func.func @slstm_seq_kernel(%arg0: i32, %arg1: memref<1x8x128xf32, #tpu.memory_space<vmem>>, %arg2: memref<8x512xf32, #tpu.memory_space<vmem>>, %arg3: memref<1x128xf32, #tpu.memory_space<vmem>>, %arg4: memref<1x128xf32, #tpu.memory_space<vmem>>, %arg5: memref<128x512xbf16, #tpu.memory_space<vmem>>, %arg6: memref<128x512xbf16, #tpu.memory_space<vmem>>, %arg7: memref<1x512xf32, #tpu.memory_space<vmem>>, %arg8: memref<1x128xf32, #tpu.memory_space<vmem>>, %arg9: memref<1x128xf32, #tpu.memory_space<vmem>>, %arg10: memref<128x4xf32, #tpu.memory_space<vmem>>, %arg11: memref<4x128xf32, #tpu.memory_space<vmem>>, %arg12: memref<128x512xbf16, #tpu.memory_space<vmem>>, %arg13: memref<1x512xf32, #tpu.memory_space<vmem>>, %arg14: memref<256x128xbf16, #tpu.memory_space<vmem>>, %arg15: memref<1x128xf32, #tpu.memory_space<vmem>>, %arg16: memref<1x8x128xf32, #tpu.memory_space<vmem>>, %arg17: memref<8x512xf32, #tpu.memory_space<vmem>>, %arg18: memref<8x512xf32, #tpu.memory_space<vmem>>) attributes {dimension_semantics = [#tpu.dimension_semantics<arbitrary>], iteration_bounds = array<i64: 1>, scalar_prefetch = 0 : i64, scratch_operands = 1 : i64, tpu.core_type = #tpu.core_type<tc>, window_params = [{transform_indices = @transform_0, window_bounds = array<i64: 1, 8, 128>}, {pipeline_mode = #tpu.pipeline_mode<synchronous>, transform_indices = @transform_1, window_bounds = array<i64: 8, 512>}, {pipeline_mode = #tpu.pipeline_mode<synchronous>, transform_indices = @transform_2, window_bounds = array<i64: 1, 128>}, {pipeline_mode = #tpu.pipeline_mode<synchronous>, transform_indices = @transform_3, window_bounds = array<i64: 1, 128>}, {pipeline_mode = #tpu.pipeline_mode<synchronous>, transform_indices = @transform_4, window_bounds = array<i64: 128, 512>}, {pipeline_mode = #tpu.pipeline_mode<synchronous>, transform_indices = @transform_5, window_bounds = array<i64: 128, 512>}, {pipeline_mode = #tpu.pipeline_mode<synchronous>, transform_indices = @transform_6, window_bounds = array<i64: 1, 512>}, {pipeline_mode = #tpu.pipeline_mode<synchronous>, transform_indices = @transform_7, window_bounds = array<i64: 1, 128>}, {pipeline_mode = #tpu.pipeline_mode<synchronous>, transform_indices = @transform_8, window_bounds = array<i64: 1, 128>}, {pipeline_mode = #tpu.pipeline_mode<synchronous>, transform_indices = @transform_9, window_bounds = array<i64: 128, 4>}, {pipeline_mode = #tpu.pipeline_mode<synchronous>, transform_indices = @transform_10, window_bounds = array<i64: 4, 128>}, {pipeline_mode = #tpu.pipeline_mode<synchronous>, transform_indices = @transform_11, window_bounds = array<i64: 128, 512>}, {pipeline_mode = #tpu.pipeline_mode<synchronous>, transform_indices = @transform_12, window_bounds = array<i64: 1, 512>}, {pipeline_mode = #tpu.pipeline_mode<synchronous>, transform_indices = @transform_13, window_bounds = array<i64: 256, 128>}, {pipeline_mode = #tpu.pipeline_mode<synchronous>, transform_indices = @transform_14, window_bounds = array<i64: 1, 128>}, {transform_indices = @transform_15, window_bounds = array<i64: 1, 8, 128>}, {pipeline_mode = #tpu.pipeline_mode<synchronous>, transform_indices = @transform_16, window_bounds = array<i64: 8, 512>}]} {
    %c0_i32 = arith.constant 0 : i32
    %0 = arith.cmpi eq, %arg0, %c0_i32 : i32
    %1 = arith.extui %0 : i1 to i32
    %c0_i32_0 = arith.constant 0 : i32
    %2 = arith.cmpi ne, %1, %c0_i32_0 : i32
    scf.if %2 {
      %c0_82 = arith.constant 0 : index
      %c0_83 = arith.constant 0 : index
      %157 = vector.load %arg2[%c0_82, %c0_83] : memref<8x512xf32, #tpu.memory_space<vmem>>, vector<8x512xf32>
      %c0_84 = arith.constant 0 : index
      %c0_85 = arith.constant 0 : index
      %158 = vector.load %arg18[%c0_84, %c0_85] : memref<8x512xf32, #tpu.memory_space<vmem>>, vector<8x512xf32>
      tpu.vector_store %arg18[%c0_84, %c0_85], %157 {strides = array<i32>} : memref<8x512xf32, #tpu.memory_space<vmem>>, vector<8x512xf32>,
    } else {
    }
    %c0 = arith.constant 0 : index
    %c0_1 = arith.constant 0 : index
    %3 = vector.load %arg18[%c0, %c0_1] : memref<8x512xf32, #tpu.memory_space<vmem>>, vector<8x128xf32>
    %c0_2 = arith.constant 0 : index
    %c128 = arith.constant 128 : index
    %4 = vector.load %arg18[%c0_2, %c128] : memref<8x512xf32, #tpu.memory_space<vmem>>, vector<8x128xf32>
    %c0_3 = arith.constant 0 : index
    %c256 = arith.constant 256 : index
    %5 = vector.load %arg18[%c0_3, %c256] : memref<8x512xf32, #tpu.memory_space<vmem>>, vector<8x128xf32>
    %c0_4 = arith.constant 0 : index
    %c384 = arith.constant 384 : index
    %6 = vector.load %arg18[%c0_4, %c384] : memref<8x512xf32, #tpu.memory_space<vmem>>, vector<8x128xf32>
    %c0_5 = arith.constant 0 : index
    %c0_6 = arith.constant 0 : index
    %c0_7 = arith.constant 0 : index
    %7 = vector.load %arg1[%c0_5, %c0_6, %c0_7] : memref<1x8x128xf32, #tpu.memory_space<vmem>>, vector<1x8x128xf32>
    %8 = vector.shape_cast %7 : vector<1x8x128xf32> to vector<8x128xf32>
    %cst = arith.constant dense<0.000000e+00> : vector<8xf32>
    %9 = vector.multi_reduction <add>, %8, %cst [1] : vector<8x128xf32> to vector<8xf32>
    %10 = vector.shape_cast %9 : vector<8xf32> to vector<8x1xf32>
    %cst_8 = arith.constant 1.280000e+02 : f32
    %11 = vector.broadcast %cst_8 : f32 to vector<8x1xf32>
    %12 = arith.divf %10, %11 : vector<8x1xf32>
    %13 = vector.broadcast %12 : vector<8x1xf32> to vector<8x128xf32>
    %14 = arith.subf %8, %13 : vector<8x128xf32>
    %15 = arith.mulf %14, %14 : vector<8x128xf32>
    %cst_9 = arith.constant dense<0.000000e+00> : vector<8xf32>
    %16 = vector.multi_reduction <add>, %15, %cst_9 [1] : vector<8x128xf32> to vector<8xf32>
    %17 = vector.shape_cast %16 : vector<8xf32> to vector<8x1xf32>
    %cst_10 = arith.constant 1.280000e+02 : f32
    %18 = vector.broadcast %cst_10 : f32 to vector<8x1xf32>
    %19 = arith.divf %17, %18 : vector<8x1xf32>
    %20 = vector.broadcast %12 : vector<8x1xf32> to vector<8x128xf32>
    %21 = arith.subf %8, %20 : vector<8x128xf32>
    %cst_11 = arith.constant 9.99999974E-6 : f32
    %22 = vector.broadcast %cst_11 : f32 to vector<8x1xf32>
    %23 = arith.addf %19, %22 : vector<8x1xf32>
    %24 = math.rsqrt %23 : vector<8x1xf32>
    %25 = vector.broadcast %24 : vector<8x1xf32> to vector<8x128xf32>
    %26 = arith.mulf %21, %25 : vector<8x128xf32>
    %c0_12 = arith.constant 0 : index
    %c0_13 = arith.constant 0 : index
    %27 = vector.load %arg3[%c0_12, %c0_13] : memref<1x128xf32, #tpu.memory_space<vmem>>, vector<1x128xf32>
    %28 = vector.broadcast %27 : vector<1x128xf32> to vector<8x128xf32>
    %29 = arith.mulf %26, %28 : vector<8x128xf32>
    %c0_14 = arith.constant 0 : index
    %c0_15 = arith.constant 0 : index
    %30 = vector.load %arg4[%c0_14, %c0_15] : memref<1x128xf32, #tpu.memory_space<vmem>>, vector<1x128xf32>
    %31 = vector.broadcast %30 : vector<1x128xf32> to vector<8x128xf32>
    %32 = arith.addf %29, %31 : vector<8x128xf32>
    %33 = arith.truncf %32 : vector<8x128xf32> to vector<8x128xbf16>
    %c0_16 = arith.constant 0 : index
    %c0_17 = arith.constant 0 : index
    %34 = vector.load %arg5[%c0_16, %c0_17] : memref<128x512xbf16, #tpu.memory_space<vmem>>, vector<128x512xbf16>
    %cst_18 = arith.constant dense<0.000000e+00> : vector<8x512xf32>
    %35 = tpu.matmul %33, %34, %cst_18 {dimension_numbers = #tpu.dot_dimension_numbers<[1], [0], [0], [1], [0, 0, 1, 1], [], []>} : vector<8x128xbf16>, vector<128x512xbf16>, vector<8x512xf32> -> vector<8x512xf32>
    %36 = arith.truncf %5 : vector<8x128xf32> to vector<8x128xbf16>
    %c0_19 = arith.constant 0 : index
    %c0_20 = arith.constant 0 : index
    %37 = vector.load %arg6[%c0_19, %c0_20] : memref<128x512xbf16, #tpu.memory_space<vmem>>, vector<128x512xbf16>
    %cst_21 = arith.constant dense<0.000000e+00> : vector<8x512xf32>
    %38 = tpu.matmul %36, %37, %cst_21 {dimension_numbers = #tpu.dot_dimension_numbers<[1], [0], [0], [1], [0, 0, 1, 1], [], []>} : vector<8x128xbf16>, vector<128x512xbf16>, vector<8x512xf32> -> vector<8x512xf32>
    %39 = arith.addf %35, %38 : vector<8x512xf32>
    %c0_22 = arith.constant 0 : index
    %c0_23 = arith.constant 0 : index
    %40 = vector.load %arg7[%c0_22, %c0_23] : memref<1x512xf32, #tpu.memory_space<vmem>>, vector<1x512xf32>
    %41 = vector.broadcast %40 : vector<1x512xf32> to vector<8x512xf32>
    %42 = arith.addf %39, %41 : vector<8x512xf32>
    %43 = vector.extract_strided_slice %42 {offsets = [0, 0], sizes = [8, 128], strides = [1, 1]} : vector<8x512xf32> to vector<8x128xf32>
    %44 = vector.extract_strided_slice %42 {offsets = [0, 128], sizes = [8, 128], strides = [1, 1]} : vector<8x512xf32> to vector<8x128xf32>
    %45 = vector.extract_strided_slice %42 {offsets = [0, 256], sizes = [8, 128], strides = [1, 1]} : vector<8x512xf32> to vector<8x128xf32>
    %46 = vector.extract_strided_slice %42 {offsets = [0, 384], sizes = [8, 128], strides = [1, 1]} : vector<8x512xf32> to vector<8x128xf32>
    %47 = arith.addf %44, %6 : vector<8x128xf32>
    %48 = arith.maximumf %47, %43 : vector<8x128xf32>
    %49 = arith.subf %43, %48 : vector<8x128xf32>
    %50 = math.exp %49 : vector<8x128xf32>
    %51 = arith.subf %44, %48 : vector<8x128xf32>
    %52 = arith.addf %51, %6 : vector<8x128xf32>
    %53 = math.exp %52 : vector<8x128xf32>
    %54 = math.tanh %45 : vector<8x128xf32>
    %55 = arith.negf %46 : vector<8x128xf32>
    %56 = math.exp %55 : vector<8x128xf32>
    %cst_24 = arith.constant 1.000000e+00 : f32
    %57 = vector.broadcast %cst_24 : f32 to vector<8x128xf32>
    %58 = arith.addf %57, %56 : vector<8x128xf32>
    %59 = arith.divf %57, %58 : vector<8x128xf32>
    %60 = arith.mulf %53, %3 : vector<8x128xf32>
    %61 = arith.mulf %50, %54 : vector<8x128xf32>
    %62 = arith.addf %60, %61 : vector<8x128xf32>
    %63 = arith.mulf %53, %4 : vector<8x128xf32>
    %64 = arith.addf %63, %50 : vector<8x128xf32>
    %65 = arith.divf %62, %64 : vector<8x128xf32>
    %66 = arith.mulf %59, %65 : vector<8x128xf32>
    %c0_25 = arith.constant 0 : index
    %c0_26 = arith.constant 0 : index
    %67 = vector.load %arg10[%c0_25, %c0_26] : memref<128x4xf32, #tpu.memory_space<vmem>>, vector<128x4xf32>
    %cst_27 = arith.constant dense<0.000000e+00> : vector<8x4xf32>
    %68 = tpu.matmul %66, %67, %cst_27 {dimension_numbers = #tpu.dot_dimension_numbers<[1], [0], [0], [1], [0, 0, 1, 1], [], []>} : vector<8x128xf32>, vector<128x4xf32>, vector<8x4xf32> -> vector<8x4xf32>
    %cst_28 = arith.constant 3.125000e-02 : f32
    %69 = vector.broadcast %cst_28 : f32 to vector<8x4xf32>
    %70 = arith.mulf %68, %69 : vector<8x4xf32>
    %c0_29 = arith.constant 0 : index
    %c0_30 = arith.constant 0 : index
    %71 = vector.load %arg11[%c0_29, %c0_30] : memref<4x128xf32, #tpu.memory_space<vmem>>, vector<4x128xf32>
    %cst_31 = arith.constant dense<0.000000e+00> : vector<8x128xf32>
    %72 = tpu.matmul %70, %71, %cst_31 {dimension_numbers = #tpu.dot_dimension_numbers<[1], [0], [0], [1], [0, 0, 1, 1], [], []>} : vector<8x4xf32>, vector<4x128xf32>, vector<8x128xf32> -> vector<8x128xf32>
    %73 = arith.subf %66, %72 : vector<8x128xf32>
    %74 = arith.mulf %73, %73 : vector<8x128xf32>
    %c0_32 = arith.constant 0 : index
    %c0_33 = arith.constant 0 : index
    %75 = vector.load %arg10[%c0_32, %c0_33] : memref<128x4xf32, #tpu.memory_space<vmem>>, vector<128x4xf32>
    %cst_34 = arith.constant dense<0.000000e+00> : vector<8x4xf32>
    %76 = tpu.matmul %74, %75, %cst_34 {dimension_numbers = #tpu.dot_dimension_numbers<[1], [0], [0], [1], [0, 0, 1, 1], [], []>} : vector<8x128xf32>, vector<128x4xf32>, vector<8x4xf32> -> vector<8x4xf32>
    %cst_35 = arith.constant 3.125000e-02 : f32
    %77 = vector.broadcast %cst_35 : f32 to vector<8x4xf32>
    %78 = arith.mulf %76, %77 : vector<8x4xf32>
    %c0_36 = arith.constant 0 : index
    %c0_37 = arith.constant 0 : index
    %79 = vector.load %arg11[%c0_36, %c0_37] : memref<4x128xf32, #tpu.memory_space<vmem>>, vector<4x128xf32>
    %cst_38 = arith.constant dense<0.000000e+00> : vector<8x128xf32>
    %80 = tpu.matmul %78, %79, %cst_38 {dimension_numbers = #tpu.dot_dimension_numbers<[1], [0], [0], [1], [0, 0, 1, 1], [], []>} : vector<8x4xf32>, vector<4x128xf32>, vector<8x128xf32> -> vector<8x128xf32>
    %cst_39 = arith.constant 9.99999974E-6 : f32
    %81 = vector.broadcast %cst_39 : f32 to vector<8x128xf32>
    %82 = arith.addf %80, %81 : vector<8x128xf32>
    %83 = math.rsqrt %82 : vector<8x128xf32>
    %84 = arith.mulf %73, %83 : vector<8x128xf32>
    %c0_40 = arith.constant 0 : index
    %c0_41 = arith.constant 0 : index
    %85 = vector.load %arg8[%c0_40, %c0_41] : memref<1x128xf32, #tpu.memory_space<vmem>>, vector<1x128xf32>
    %86 = vector.broadcast %85 : vector<1x128xf32> to vector<8x128xf32>
    %87 = arith.mulf %84, %86 : vector<8x128xf32>
    %c0_42 = arith.constant 0 : index
    %c0_43 = arith.constant 0 : index
    %88 = vector.load %arg9[%c0_42, %c0_43] : memref<1x128xf32, #tpu.memory_space<vmem>>, vector<1x128xf32>
    %89 = vector.broadcast %88 : vector<1x128xf32> to vector<8x128xf32>
    %90 = arith.addf %87, %89 : vector<8x128xf32>
    %91 = arith.truncf %90 : vector<8x128xf32> to vector<8x128xbf16>
    %c0_44 = arith.constant 0 : index
    %c0_45 = arith.constant 0 : index
    %92 = vector.load %arg12[%c0_44, %c0_45] : memref<128x512xbf16, #tpu.memory_space<vmem>>, vector<128x512xbf16>
    %cst_46 = arith.constant dense<0.000000e+00> : vector<8x512xf32>
    %93 = tpu.matmul %91, %92, %cst_46 {dimension_numbers = #tpu.dot_dimension_numbers<[1], [0], [0], [1], [0, 0, 1, 1], [], []>} : vector<8x128xbf16>, vector<128x512xbf16>, vector<8x512xf32> -> vector<8x512xf32>
    %c0_47 = arith.constant 0 : index
    %c0_48 = arith.constant 0 : index
    %94 = vector.load %arg13[%c0_47, %c0_48] : memref<1x512xf32, #tpu.memory_space<vmem>>, vector<1x512xf32>
    %95 = vector.broadcast %94 : vector<1x512xf32> to vector<8x512xf32>
    %96 = arith.addf %93, %95 : vector<8x512xf32>
    %97 = vector.extract_strided_slice %96 {offsets = [0, 0], sizes = [8, 256], strides = [1, 1]} : vector<8x512xf32> to vector<8x256xf32>
    %98 = vector.extract_strided_slice %96 {offsets = [0, 256], sizes = [8, 256], strides = [1, 1]} : vector<8x512xf32> to vector<8x256xf32>
    %cst_49 = arith.constant 5.000000e-01 : f32
    %99 = vector.broadcast %cst_49 : f32 to vector<8x256xf32>
    %100 = arith.mulf %99, %98 : vector<8x256xf32>
    %cst_50 = arith.constant 0.707106769 : f32
    %101 = vector.broadcast %cst_50 : f32 to vector<8x256xf32>
    %102 = arith.mulf %98, %101 : vector<8x256xf32>
    %103 = math.absf %102 : vector<8x256xf32>
    %cst_51 = arith.constant 0.327591091 : f32
    %104 = vector.broadcast %cst_51 : f32 to vector<8x256xf32>
    %105 = arith.mulf %104, %103 : vector<8x256xf32>
    %cst_52 = arith.constant 1.000000e+00 : f32
    %106 = vector.broadcast %cst_52 : f32 to vector<8x256xf32>
    %107 = arith.addf %106, %105 : vector<8x256xf32>
    %cst_53 = arith.constant 1.000000e+00 : f32
    %108 = vector.broadcast %cst_53 : f32 to vector<8x256xf32>
    %109 = arith.divf %108, %107 : vector<8x256xf32>
    %cst_54 = arith.constant 1.06140542 : f32
    %110 = vector.broadcast %cst_54 : f32 to vector<8x256xf32>
    %111 = arith.mulf %110, %109 : vector<8x256xf32>
    %cst_55 = arith.constant -1.45315206 : f32
    %112 = vector.broadcast %cst_55 : f32 to vector<8x256xf32>
    %113 = arith.addf %111, %112 : vector<8x256xf32>
    %114 = arith.mulf %113, %109 : vector<8x256xf32>
    %cst_56 = arith.constant 1.42141378 : f32
    %115 = vector.broadcast %cst_56 : f32 to vector<8x256xf32>
    %116 = arith.addf %114, %115 : vector<8x256xf32>
    %117 = arith.mulf %116, %109 : vector<8x256xf32>
    %cst_57 = arith.constant -0.284496725 : f32
    %118 = vector.broadcast %cst_57 : f32 to vector<8x256xf32>
    %119 = arith.addf %117, %118 : vector<8x256xf32>
    %120 = arith.mulf %119, %109 : vector<8x256xf32>
    %cst_58 = arith.constant 0.254829586 : f32
    %121 = vector.broadcast %cst_58 : f32 to vector<8x256xf32>
    %122 = arith.addf %120, %121 : vector<8x256xf32>
    %123 = arith.mulf %122, %109 : vector<8x256xf32>
    %cst_59 = arith.constant 0.000000e+00 : f32
    %124 = vector.broadcast %cst_59 : f32 to vector<8x256xf32>
    %125 = arith.subf %124, %103 : vector<8x256xf32>
    %126 = arith.mulf %125, %103 : vector<8x256xf32>
    %127 = math.exp %126 : vector<8x256xf32>
    %128 = arith.mulf %123, %127 : vector<8x256xf32>
    %cst_60 = arith.constant 1.000000e+00 : f32
    %129 = vector.broadcast %cst_60 : f32 to vector<8x256xf32>
    %130 = arith.subf %129, %128 : vector<8x256xf32>
    %cst_61 = arith.constant 0.000000e+00 : f32
    %131 = vector.broadcast %cst_61 : f32 to vector<8x256xf32>
    %132 = arith.cmpf olt, %102, %131 : vector<8x256xf32>
    %cst_62 = arith.constant 0.000000e+00 : f32
    %133 = vector.broadcast %cst_62 : f32 to vector<8x256xf32>
    %134 = arith.subf %133, %130 : vector<8x256xf32>
    %135 = arith.select %132, %134, %130 : vector<8x256xi1>, vector<8x256xf32>
    %cst_63 = arith.constant 1.000000e+00 : f32
    %136 = vector.broadcast %cst_63 : f32 to vector<8x256xf32>
    %137 = arith.addf %136, %135 : vector<8x256xf32>
    %138 = arith.mulf %100, %137 : vector<8x256xf32>
    %139 = arith.addf %97, %138 : vector<8x256xf32>
    %140 = arith.truncf %139 : vector<8x256xf32> to vector<8x256xbf16>
    %c0_64 = arith.constant 0 : index
    %c0_65 = arith.constant 0 : index
    %141 = vector.load %arg14[%c0_64, %c0_65] : memref<256x128xbf16, #tpu.memory_space<vmem>>, vector<256x128xbf16>
    %cst_66 = arith.constant dense<0.000000e+00> : vector<8x128xf32>
    %142 = tpu.matmul %140, %141, %cst_66 {dimension_numbers = #tpu.dot_dimension_numbers<[1], [0], [0], [1], [0, 0, 1, 1], [], []>} : vector<8x256xbf16>, vector<256x128xbf16>, vector<8x128xf32> -> vector<8x128xf32>
    %c0_67 = arith.constant 0 : index
    %c0_68 = arith.constant 0 : index
    %143 = vector.load %arg15[%c0_67, %c0_68] : memref<1x128xf32, #tpu.memory_space<vmem>>, vector<1x128xf32>
    %144 = vector.broadcast %143 : vector<1x128xf32> to vector<8x128xf32>
    %145 = arith.addf %142, %144 : vector<8x128xf32>
    %146 = arith.addf %145, %8 : vector<8x128xf32>
    %c0_69 = arith.constant 0 : index
    %c0_70 = arith.constant 0 : index
    %c0_71 = arith.constant 0 : index
    %147 = vector.load %arg16[%c0_69, %c0_70, %c0_71] : memref<1x8x128xf32, #tpu.memory_space<vmem>>, vector<1x8x128xf32>
    %148 = vector.shape_cast %147 : vector<1x8x128xf32> to vector<8x128xf32>
    %149 = vector.shape_cast %146 : vector<8x128xf32> to vector<1x8x128xf32>
    tpu.vector_store %arg16[%c0_69, %c0_70, %c0_71], %149 {strides = array<i32>} : memref<1x8x128xf32, #tpu.memory_space<vmem>>, vector<1x8x128xf32>,
    %c0_72 = arith.constant 0 : index
    %c0_73 = arith.constant 0 : index
    %150 = vector.load %arg18[%c0_72, %c0_73] : memref<8x512xf32, #tpu.memory_space<vmem>>, vector<8x128xf32>
    tpu.vector_store %arg18[%c0_72, %c0_73], %62 {strides = array<i32>} : memref<8x512xf32, #tpu.memory_space<vmem>>, vector<8x128xf32>,
    %c0_74 = arith.constant 0 : index
    %c128_75 = arith.constant 128 : index
    %151 = vector.load %arg18[%c0_74, %c128_75] : memref<8x512xf32, #tpu.memory_space<vmem>>, vector<8x128xf32>
    tpu.vector_store %arg18[%c0_74, %c128_75], %64 {strides = array<i32>} : memref<8x512xf32, #tpu.memory_space<vmem>>, vector<8x128xf32>,
    %c0_76 = arith.constant 0 : index
    %c256_77 = arith.constant 256 : index
    %152 = vector.load %arg18[%c0_76, %c256_77] : memref<8x512xf32, #tpu.memory_space<vmem>>, vector<8x128xf32>
    tpu.vector_store %arg18[%c0_76, %c256_77], %66 {strides = array<i32>} : memref<8x512xf32, #tpu.memory_space<vmem>>, vector<8x128xf32>,
    %c0_78 = arith.constant 0 : index
    %c384_79 = arith.constant 384 : index
    %153 = vector.load %arg18[%c0_78, %c384_79] : memref<8x512xf32, #tpu.memory_space<vmem>>, vector<8x128xf32>
    tpu.vector_store %arg18[%c0_78, %c384_79], %48 {strides = array<i32>} : memref<8x512xf32, #tpu.memory_space<vmem>>, vector<8x128xf32>,
    %c0_i32_80 = arith.constant 0 : i32
    %154 = arith.cmpi eq, %arg0, %c0_i32_80 : i32
    %155 = arith.extui %154 : i1 to i32
    %c0_i32_81 = arith.constant 0 : i32
    %156 = arith.cmpi ne, %155, %c0_i32_81 : i32
    scf.if %156 {
      %c0_82 = arith.constant 0 : index
      %c0_83 = arith.constant 0 : index
      %157 = vector.load %arg18[%c0_82, %c0_83] : memref<8x512xf32, #tpu.memory_space<vmem>>, vector<8x512xf32>
      %c0_84 = arith.constant 0 : index
      %c0_85 = arith.constant 0 : index
      %158 = vector.load %arg17[%c0_84, %c0_85] : memref<8x512xf32, #tpu.memory_space<vmem>>, vector<8x512xf32>
      tpu.vector_store %arg17[%c0_84, %c0_85], %157 {strides = array<i32>} : memref<8x512xf32, #tpu.memory_space<vmem>>, vector<8x512xf32>,
    } else {
    }
    return
  }
  func.func @transform_0(%arg0: i32) -> (i32, i32, i32) {
    %c0_i32 = arith.constant 0 : i32
    %c0_i32_0 = arith.constant 0 : i32
    %c0_i32_1 = arith.constant 0 : i32
    return %arg0, %c0_i32, %c0_i32_0 : i32, i32, i32
  }
  func.func @transform_1(%arg0: i32) -> (i32, i32) {
    %c0_i32 = arith.constant 0 : i32
    %c0_i32_0 = arith.constant 0 : i32
    %c0_i32_1 = arith.constant 0 : i32
    return %c0_i32, %c0_i32_0 : i32, i32
  }
  func.func @transform_2(%arg0: i32) -> (i32, i32) {
    %c0_i32 = arith.constant 0 : i32
    %c0_i32_0 = arith.constant 0 : i32
    %c0_i32_1 = arith.constant 0 : i32
    return %c0_i32, %c0_i32_0 : i32, i32
  }
  func.func @transform_3(%arg0: i32) -> (i32, i32) {
    %c0_i32 = arith.constant 0 : i32
    %c0_i32_0 = arith.constant 0 : i32
    %c0_i32_1 = arith.constant 0 : i32
    return %c0_i32, %c0_i32_0 : i32, i32
  }
  func.func @transform_4(%arg0: i32) -> (i32, i32) {
    %c0_i32 = arith.constant 0 : i32
    %c0_i32_0 = arith.constant 0 : i32
    %c0_i32_1 = arith.constant 0 : i32
    return %c0_i32, %c0_i32_0 : i32, i32
  }
  func.func @transform_5(%arg0: i32) -> (i32, i32) {
    %c0_i32 = arith.constant 0 : i32
    %c0_i32_0 = arith.constant 0 : i32
    %c0_i32_1 = arith.constant 0 : i32
    return %c0_i32, %c0_i32_0 : i32, i32
  }
  func.func @transform_6(%arg0: i32) -> (i32, i32) {
    %c0_i32 = arith.constant 0 : i32
    %c0_i32_0 = arith.constant 0 : i32
    %c0_i32_1 = arith.constant 0 : i32
    return %c0_i32, %c0_i32_0 : i32, i32
  }
  func.func @transform_7(%arg0: i32) -> (i32, i32) {
    %c0_i32 = arith.constant 0 : i32
    %c0_i32_0 = arith.constant 0 : i32
    %c0_i32_1 = arith.constant 0 : i32
    return %c0_i32, %c0_i32_0 : i32, i32
  }
  func.func @transform_8(%arg0: i32) -> (i32, i32) {
    %c0_i32 = arith.constant 0 : i32
    %c0_i32_0 = arith.constant 0 : i32
    %c0_i32_1 = arith.constant 0 : i32
    return %c0_i32, %c0_i32_0 : i32, i32
  }
  func.func @transform_9(%arg0: i32) -> (i32, i32) {
    %c0_i32 = arith.constant 0 : i32
    %c0_i32_0 = arith.constant 0 : i32
    %c0_i32_1 = arith.constant 0 : i32
    return %c0_i32, %c0_i32_0 : i32, i32
  }
  func.func @transform_10(%arg0: i32) -> (i32, i32) {
    %c0_i32 = arith.constant 0 : i32
    %c0_i32_0 = arith.constant 0 : i32
    %c0_i32_1 = arith.constant 0 : i32
    return %c0_i32, %c0_i32_0 : i32, i32
  }
  func.func @transform_11(%arg0: i32) -> (i32, i32) {
    %c0_i32 = arith.constant 0 : i32
    %c0_i32_0 = arith.constant 0 : i32
    %c0_i32_1 = arith.constant 0 : i32
    return %c0_i32, %c0_i32_0 : i32, i32
  }
  func.func @transform_12(%arg0: i32) -> (i32, i32) {
    %c0_i32 = arith.constant 0 : i32
    %c0_i32_0 = arith.constant 0 : i32
    %c0_i32_1 = arith.constant 0 : i32
    return %c0_i32, %c0_i32_0 : i32, i32
  }
  func.func @transform_13(%arg0: i32) -> (i32, i32) {
    %c0_i32 = arith.constant 0 : i32
    %c0_i32_0 = arith.constant 0 : i32
    %c0_i32_1 = arith.constant 0 : i32
    return %c0_i32, %c0_i32_0 : i32, i32
  }
  func.func @transform_14(%arg0: i32) -> (i32, i32) {
    %c0_i32 = arith.constant 0 : i32
    %c0_i32_0 = arith.constant 0 : i32
    %c0_i32_1 = arith.constant 0 : i32
    return %c0_i32, %c0_i32_0 : i32, i32
  }
  func.func @transform_15(%arg0: i32) -> (i32, i32, i32) {
    %c0_i32 = arith.constant 0 : i32
    %c0_i32_0 = arith.constant 0 : i32
    %c0_i32_1 = arith.constant 0 : i32
    return %arg0, %c0_i32, %c0_i32_0 : i32, i32, i32
  }
  func.func @transform_16(%arg0: i32) -> (i32, i32) {
    %c0_i32 = arith.constant 0 : i32
    %c0_i32_0 = arith.constant 0 : i32
    %c0_i32_1 = arith.constant 0 : i32
    return %c0_i32, %c0_i32_0 : i32, i32
  }
}

</mosaic_0001>

<llo_original>
// kernel: slstm_forward_seq.1
$region0: #{slstm_forward_seq.1}
  #allocation0 [shape = 'u32[]', space=smem, size = 0x4, offset = 0x4, fixed_abs, tag = 'smem constant byte address 0x4 - core index']
  #allocation1 [shape = 'u32[72,128]{1,0:T(1,128)}', space=vmem, size = 0x9000, scoped, tag = 'internal scratch']
  #allocation2 [shape = 'f32[8,512]{1,0:T(8,128)}', space=vmem, size = 0x4000, scoped, tag = 'scratch operand']
  %s0 = inlined_call_operand.vmem [shape: f32[1,8,128], index: 0, kind: input, shape index: {}]
  %s1 = inlined_call_operand.vmem [shape: f32[8,512], index: 1, kind: input, shape index: {}, may-alias: {1,16}]
  %s2 = inlined_call_operand.vmem [shape: f32[1,128], index: 2, kind: input, shape index: {}]
  %s3 = inlined_call_operand.vmem [shape: f32[1,128], index: 3, kind: input, shape index: {}]
  %s4 = inlined_call_operand.hbm [shape: bf16[128,512], index: 4, kind: input, shape index: {}]
  %s5 = inlined_call_operand.hbm [shape: bf16[128,512], index: 5, kind: input, shape index: {}]
  %s6 = inlined_call_operand.vmem [shape: f32[1,512], index: 6, kind: input, shape index: {}]
  %s7 = inlined_call_operand.vmem [shape: f32[1,128], index: 7, kind: input, shape index: {}]
  %s8 = inlined_call_operand.vmem [shape: f32[1,128], index: 8, kind: input, shape index: {}]
  %s9 = inlined_call_operand.vmem [shape: f32[128,4], index: 9, kind: input, shape index: {}]
  %s10 = inlined_call_operand.vmem [shape: f32[4,128], index: 10, kind: input, shape index: {}]
  %s11 = inlined_call_operand.hbm [shape: bf16[128,512], index: 11, kind: input, shape index: {}]
  %s12 = inlined_call_operand.vmem [shape: f32[1,512], index: 12, kind: input, shape index: {}]
  %s13 = inlined_call_operand.vmem [shape: bf16[256,128], index: 13, kind: input, shape index: {}]
  %s14 = inlined_call_operand.vmem [shape: f32[1,128], index: 14, kind: input, shape index: {}]
  %s15 = inlined_call_operand.vmem [shape: f32[1,8,128], index: 15, kind: output, shape index: {0}]
  %s16 = inlined_call_operand.vmem [shape: f32[8,512], index: 16, kind: output, shape index: {1}, may-alias: {1,16}]
  %17 = xla_tuple %s15, %s16
  %s18 = sld [smem:[#allocation0]]
  $region98: #{slstm_forward_seq.1} parent=0
    _
  %s20 = ssub.s32 1, %s18
  %s21 = scalar_select 0, %s20, %s18
  $region1: #{slstm_forward_seq.1} parent=0
    #allocation3 [shape = 'u8[131072]{0}', space=vmem, size = 0x20000, scoped, tag = 'input window, operand 4, single buffered']
    #allocation4 [shape = 's32[1]{0}', space=sflag, size = 0x4, scoped, tag = 'scoped memory for slstm_forward_seq.1']
    #allocation5 [shape = 'u8[131072]{0}', space=vmem, size = 0x20000, scoped, tag = 'input window, operand 5, single buffered']
    #allocation6 [shape = 's32[1]{0}', space=sflag, size = 0x4, scoped, tag = 'scoped memory for slstm_forward_seq.1']
    #allocation7 [shape = 'u8[131072]{0}', space=vmem, size = 0x20000, scoped, tag = 'input window, operand 11, single buffered']
    %22 = vsyncpa [#allocation4], 0
    %23 = vsyncpa [#allocation6], 0
    // Predicated region
    $region2: #{slstm_forward_seq.1} parent=1 // pred_check
      _
    $region3: #{slstm_forward_seq.1} parent=1 // pred_check_branch
      %25 = sbr.rel (0) target = $region5
    $region4: #{slstm_forward_seq.1} parent=1 // pred_region
      _
    $region5: #{slstm_forward_seq.1} parent=1 // pred_fallthru
      _
    // Predicated region
    $region6: #{slstm_forward_seq.1} parent=1 // pred_check
      _
    $region7: #{slstm_forward_seq.1} parent=1 // pred_check_branch
      %27 = sbr.rel (0) target = $region9
    $region8: #{slstm_forward_seq.1} parent=1 // pred_region
      _
    $region9: #{slstm_forward_seq.1} parent=1 // pred_fallthru
      _
    // Predicated region
    $region10: #{slstm_forward_seq.1} parent=1 // pred_check
      _
    $region11: #{slstm_forward_seq.1} parent=1 // pred_check_branch
      %29 = sbr.rel (0) target = $region13
    $region12: #{slstm_forward_seq.1} parent=1 // pred_region
      _
    $region13: #{slstm_forward_seq.1} parent=1 // pred_fallthru
      _
    // Predicated region
    $region14: #{slstm_forward_seq.1} parent=1 // pred_check
      _
    $region15: #{slstm_forward_seq.1} parent=1 // pred_check_branch
      %31 = sbr.rel (0) target = $region17
    $region16: #{slstm_forward_seq.1} parent=1 // pred_region
      _
    $region17: #{slstm_forward_seq.1} parent=1 // pred_fallthru
      _
    // Predicated region
    $region18: #{slstm_forward_seq.1} parent=1 // pred_check
      _
    $region19: #{slstm_forward_seq.1} parent=1 // pred_check_branch
      %33 = sbr.rel (0) target = $region21
    $region20: #{slstm_forward_seq.1} parent=1 // pred_region
      %35 = vsyncadd [#allocation4], 0
      %s36 = sshll.u32 %s4, 4
      %s37 = int_to_ptr.hbm [resolvable:$true] %s36
      %s38 = sshll.u32 [#allocation3], 4
      %s39 = int_to_ptr.vmem [resolvable:$true] %s38
      %44 = dma.hbm_to_vmem [thread:$0]  %s37, 4096, %s39, [#allocation4], 256, 256, 16
    $region21: #{slstm_forward_seq.1} parent=1 // pred_fallthru
      _
    // Predicated region
    $region22: #{slstm_forward_seq.1} parent=1 // pred_check
      _
    $region23: #{slstm_forward_seq.1} parent=1 // pred_check_branch
      %46 = sbr.rel (0) target = $region25
    $region24: #{slstm_forward_seq.1} parent=1 // pred_region
      %48 = vsyncadd [#allocation6], 0
      %s49 = sshll.u32 %s5, 4
      %s50 = int_to_ptr.hbm [resolvable:$true] %s49
      %s51 = sshll.u32 [#allocation5], 4
      %s52 = int_to_ptr.vmem [resolvable:$true] %s51
      %57 = dma.hbm_to_vmem [thread:$0]  %s50, 4096, %s52, [#allocation6], 256, 256, 16
    $region25: #{slstm_forward_seq.1} parent=1 // pred_fallthru
      _
    // Predicated region
    $region26: #{slstm_forward_seq.1} parent=1 // pred_check
      _
    $region27: #{slstm_forward_seq.1} parent=1 // pred_check_branch
      %59 = sbr.rel (0) target = $region29
    $region28: #{slstm_forward_seq.1} parent=1 // pred_region
      _
    $region29: #{slstm_forward_seq.1} parent=1 // pred_fallthru
      _
    // Predicated region
    $region30: #{slstm_forward_seq.1} parent=1 // pred_check
      _
    $region31: #{slstm_forward_seq.1} parent=1 // pred_check_branch
      %61 = sbr.rel (0) target = $region33
    $region32: #{slstm_forward_seq.1} parent=1 // pred_region
      _
    $region33: #{slstm_forward_seq.1} parent=1 // pred_fallthru
      _
    // Predicated region
    $region34: #{slstm_forward_seq.1} parent=1 // pred_check
      _
    $region35: #{slstm_forward_seq.1} parent=1 // pred_check_branch
      %63 = sbr.rel (0) target = $region37
    $region36: #{slstm_forward_seq.1} parent=1 // pred_region
      _
    $region37: #{slstm_forward_seq.1} parent=1 // pred_fallthru
      _
    // Predicated region
    $region38: #{slstm_forward_seq.1} parent=1 // pred_check
      _
    $region39: #{slstm_forward_seq.1} parent=1 // pred_check_branch
      %65 = sbr.rel (0) target = $region41
    $region40: #{slstm_forward_seq.1} parent=1 // pred_region
      _
    $region41: #{slstm_forward_seq.1} parent=1 // pred_fallthru
      _
    // Predicated region
    $region42: #{slstm_forward_seq.1} parent=1 // pred_check
      _
    $region43: #{slstm_forward_seq.1} parent=1 // pred_check_branch
      %67 = sbr.rel (0) target = $region45
    $region44: #{slstm_forward_seq.1} parent=1 // pred_region
      _
    $region45: #{slstm_forward_seq.1} parent=1 // pred_fallthru
      _
    // Predicated region
    $region46: #{slstm_forward_seq.1} parent=1 // pred_check
      _
    $region47: #{slstm_forward_seq.1} parent=1 // pred_check_branch
      %69 = sbr.rel (0) target = $region49
    $region48: #{slstm_forward_seq.1} parent=1 // pred_region
      %71 = vsyncadd [#allocation6], 0
      %s72 = sshll.u32 %s11, 4
      %s73 = int_to_ptr.hbm [resolvable:$true] %s72
      %s74 = sshll.u32 [#allocation7], 4
      %s75 = int_to_ptr.vmem [resolvable:$true] %s74
      %80 = dma.hbm_to_vmem [thread:$0]  %s73, 4096, %s75, [#allocation6], 256, 256, 16
    $region49: #{slstm_forward_seq.1} parent=1 // pred_fallthru
      _
    // Predicated region
    $region50: #{slstm_forward_seq.1} parent=1 // pred_check
      _
    $region51: #{slstm_forward_seq.1} parent=1 // pred_check_branch
      %82 = sbr.rel (0) target = $region53
    $region52: #{slstm_forward_seq.1} parent=1 // pred_region
      _
    $region53: #{slstm_forward_seq.1} parent=1 // pred_fallthru
      _
    // Predicated region
    $region54: #{slstm_forward_seq.1} parent=1 // pred_check
      _
    $region55: #{slstm_forward_seq.1} parent=1 // pred_check_branch
      %84 = sbr.rel (0) target = $region57
    $region56: #{slstm_forward_seq.1} parent=1 // pred_region
      _
    $region57: #{slstm_forward_seq.1} parent=1 // pred_fallthru
      _
    // Predicated region
    $region58: #{slstm_forward_seq.1} parent=1 // pred_check
      _
    $region59: #{slstm_forward_seq.1} parent=1 // pred_check_branch
      %86 = sbr.rel (0) target = $region61
    $region60: #{slstm_forward_seq.1} parent=1 // pred_region
      _
    $region61: #{slstm_forward_seq.1} parent=1 // pred_fallthru
      _
    // Predicated region
    $region62: #{slstm_forward_seq.1} parent=1 // pred_check
      _
    $region63: #{slstm_forward_seq.1} parent=1 // pred_check_branch
      %88 = sbr.rel (0) target = $region65
    $region64: #{slstm_forward_seq.1} parent=1 // pred_region
      %90 = dma.done [#allocation4], 4096
    $region65: #{slstm_forward_seq.1} parent=1 // pred_fallthru
      _
    // Predicated region
    $region66: #{slstm_forward_seq.1} parent=1 // pred_check
      _
    $region67: #{slstm_forward_seq.1} parent=1 // pred_check_branch
      %92 = sbr.rel (0) target = $region69
    $region68: #{slstm_forward_seq.1} parent=1 // pred_region
      %94 = dma.done [#allocation6], 4096
    $region69: #{slstm_forward_seq.1} parent=1 // pred_fallthru
      _
    // Predicated region
    $region70: #{slstm_forward_seq.1} parent=1 // pred_check
      _
    $region71: #{slstm_forward_seq.1} parent=1 // pred_check_branch
      %96 = sbr.rel (0) target = $region73
    $region72: #{slstm_forward_seq.1} parent=1 // pred_region
      %98 = dma.done [#allocation6], 4096
    $region73: #{slstm_forward_seq.1} parent=1 // pred_fallthru
      _
    %p99 = scmp.eq.s32.totalorder 0, 0
    // Predicated region
    $region74: #{slstm_forward_seq.1} parent=1 // pred_check
      %p100 = pneg %p99
    $region75: #{slstm_forward_seq.1} parent=1 // pred_check_branch
      %102 = sbr.rel (%p100) target = $region77
    $region76: #{slstm_forward_seq.1} parent=1 // pred_region
      %v103 = vld [vmem:[%s1] sm:$0xff]
      %v104 = vld [vmem:[%s1 + $0x8] sm:$0xff]
      %v105 = vld [vmem:[%s1 + $0x10] sm:$0xff]
      %v106 = vld [vmem:[%s1 + $0x18] sm:$0xff]
      %107 = vst [vmem:[#allocation2] sm:$0xff] %v103
      %108 = vst [vmem:[#allocation2 + $0x8] sm:$0xff] %v104
      %109 = vst [vmem:[#allocation2 + $0x10] sm:$0xff] %v105
      %110 = vst [vmem:[#allocation2 + $0x18] sm:$0xff] %v106
    $region77: #{slstm_forward_seq.1} parent=1 // pred_fallthru
      _
    %v111 = vld [vmem:[#allocation2] sm:$0xff]
    %v112 = vld [vmem:[#allocation2 + $0x8] sm:$0xff]
    %v113 = vld [vmem:[#allocation2 + $0x10] sm:$0xff]
    %v114 = vld [vmem:[#allocation2 + $0x18] sm:$0xff]
    %v115 = vld [vmem:[%s0] sm:$0xff]
    %116 = vadd.xlane.f32.xlu0 %v115
    %v117 = vpop.xlane.xlu0 %116
    %v118 = vrcp.pop 128.0
    %v119 = vmul.f32 128.0, %v118
    %v120 = vsub.f32 1.0, %v119
    %v121 = vmul.f32 %v118, %v120
    %v122 = vadd.f32 %v118, %v121
    %vm123 = vweird.f32 %v118
    %v124 = vsel %vm123, %v118, %v122
    %v125 = vmul.f32 %v117, %v124
    %v126 = vsub.f32 %v115, %v125
    %v127 = vmul.f32 %v126, %v126
    %128 = vadd.xlane.f32.xlu0 %v127
    %v129 = vpop.xlane.xlu0 %128
    %v130 = vmul.f32 %v129, %v124
    %v131 = vadd.f32 %v130, 1e-05
    %v132 = vrsqrt.pop %v131
    %v133 = vmul.f32 %v132, %v131
    %v134 = vmul.f32 %v133, %v132
    %v135 = vmul.f32 0.5, %v134
    %v136 = vsub.f32 1.5, %v135
    %v137 = vmul.f32 %v132, %v136
    %vm138 = vweird.f32 %v131
    %vm139 = vweird.f32 %v132
    %vm140 = vmor %vm138, %vm139
    %v141 = vsel %vm140, %v132, %v137
    %v142 = vmul.f32 %v126, %v141
    %v143 = vld [vmem:[%s2] sm:$0x1]
    %v145 = vperm.slane %v143, 0
    %v147 = vmul.f32 %v142, %v145
    %v148 = vld [vmem:[%s3] sm:$0x1]
    %v150 = vperm.slane %v148, 0
    %v152 = vadd.f32 %v147, %v150
    %v153 = vpack.c.bf16 %v152, %v152
    %v154 = vld [vmem:[#allocation3] sm:$0xff]
    %v155 = vld [vmem:[#allocation3 + $0x8] sm:$0xff]
    %v156 = vld [vmem:[#allocation3 + $0x10] sm:$0xff]
    %v157 = vld [vmem:[#allocation3 + $0x18] sm:$0xff]
    %v158 = vld [vmem:[#allocation3 + $0x20] sm:$0xff]
    %v159 = vld [vmem:[#allocation3 + $0x28] sm:$0xff]
    %v160 = vld [vmem:[#allocation3 + $0x30] sm:$0xff]
    %v161 = vld [vmem:[#allocation3 + $0x38] sm:$0xff]
    %v162 = vld [vmem:[#allocation3 + $0x40] sm:$0xff]
    %v163 = vld [vmem:[#allocation3 + $0x48] sm:$0xff]
    %v164 = vld [vmem:[#allocation3 + $0x50] sm:$0xff]
    %v165 = vld [vmem:[#allocation3 + $0x58] sm:$0xff]
    %v166 = vld [vmem:[#allocation3 + $0x60] sm:$0xff]
    %v167 = vld [vmem:[#allocation3 + $0x68] sm:$0xff]
    %v168 = vld [vmem:[#allocation3 + $0x70] sm:$0xff]
    %v169 = vld [vmem:[#allocation3 + $0x78] sm:$0xff]
    %v170 = vld [vmem:[#allocation3 + $0x80] sm:$0xff]
    %v171 = vld [vmem:[#allocation3 + $0x88] sm:$0xff]
    %v172 = vld [vmem:[#allocation3 + $0x90] sm:$0xff]
    %v173 = vld [vmem:[#allocation3 + $0x98] sm:$0xff]
    %v174 = vld [vmem:[#allocation3 + $0xa0] sm:$0xff]
    %v175 = vld [vmem:[#allocation3 + $0xa8] sm:$0xff]
    %v176 = vld [vmem:[#allocation3 + $0xb0] sm:$0xff]
    %v177 = vld [vmem:[#allocation3 + $0xb8] sm:$0xff]
    %v178 = vld [vmem:[#allocation3 + $0xc0] sm:$0xff]
    %v179 = vld [vmem:[#allocation3 + $0xc8] sm:$0xff]
    %v180 = vld [vmem:[#allocation3 + $0xd0] sm:$0xff]
    %v181 = vld [vmem:[#allocation3 + $0xd8] sm:$0xff]
    %v182 = vld [vmem:[#allocation3 + $0xe0] sm:$0xff]
    %v183 = vld [vmem:[#allocation3 + $0xe8] sm:$0xff]
    %v184 = vld [vmem:[#allocation3 + $0xf0] sm:$0xff]
    %v185 = vld [vmem:[#allocation3 + $0xf8] sm:$0xff]
    %v186 = vpack.c.bf16 %v113, %v113
    %v187 = vld [vmem:[#allocation5] sm:$0xff]
    %v188 = vld [vmem:[#allocation5 + $0x8] sm:$0xff]
    %v189 = vld [vmem:[#allocation5 + $0x10] sm:$0xff]
    %v190 = vld [vmem:[#allocation5 + $0x18] sm:$0xff]
    %v191 = vld [vmem:[#allocation5 + $0x20] sm:$0xff]
    %v192 = vld [vmem:[#allocation5 + $0x28] sm:$0xff]
    %v193 = vld [vmem:[#allocation5 + $0x30] sm:$0xff]
    %v194 = vld [vmem:[#allocation5 + $0x38] sm:$0xff]
    %v195 = vld [vmem:[#allocation5 + $0x40] sm:$0xff]
    %v196 = vld [vmem:[#allocation5 + $0x48] sm:$0xff]
    %v197 = vld [vmem:[#allocation5 + $0x50] sm:$0xff]
    %v198 = vld [vmem:[#allocation5 + $0x58] sm:$0xff]
    %v199 = vld [vmem:[#allocation5 + $0x60] sm:$0xff]
    %v200 = vld [vmem:[#allocation5 + $0x68] sm:$0xff]
    %v201 = vld [vmem:[#allocation5 + $0x70] sm:$0xff]
    %v202 = vld [vmem:[#allocation5 + $0x78] sm:$0xff]
    %v203 = vld [vmem:[#allocation5 + $0x80] sm:$0xff]
    %v204 = vld [vmem:[#allocation5 + $0x88] sm:$0xff]
    %v205 = vld [vmem:[#allocation5 + $0x90] sm:$0xff]
    %v206 = vld [vmem:[#allocation5 + $0x98] sm:$0xff]
    %v207 = vld [vmem:[#allocation5 + $0xa0] sm:$0xff]
    %v208 = vld [vmem:[#allocation5 + $0xa8] sm:$0xff]
    %v209 = vld [vmem:[#allocation5 + $0xb0] sm:$0xff]
    %v210 = vld [vmem:[#allocation5 + $0xb8] sm:$0xff]
    %v211 = vld [vmem:[#allocation5 + $0xc0] sm:$0xff]
    %v212 = vld [vmem:[#allocation5 + $0xc8] sm:$0xff]
    %v213 = vld [vmem:[#allocation5 + $0xd0] sm:$0xff]
    %v214 = vld [vmem:[#allocation5 + $0xd8] sm:$0xff]
    %v215 = vld [vmem:[#allocation5 + $0xe0] sm:$0xff]
    %v216 = vld [vmem:[#allocation5 + $0xe8] sm:$0xff]
    %v217 = vld [vmem:[#allocation5 + $0xf0] sm:$0xff]
    %v218 = vld [vmem:[#allocation5 + $0xf8] sm:$0xff]
    %v251 = vunpack.c.l.b16 %v187
    %v252 = vunpack.c.h.b16 %v187
    %v253 = vunpack.c.l.b16 %v188
    %v254 = vunpack.c.h.b16 %v188
    %v255 = vunpack.c.l.b16 %v189
    %v256 = vunpack.c.h.b16 %v189
    %v257 = vunpack.c.l.b16 %v190
    %v258 = vunpack.c.h.b16 %v190
    %v259 = vunpack.c.l.b16 %v191
    %v260 = vunpack.c.h.b16 %v191
    %v261 = vunpack.c.l.b16 %v192
    %v262 = vunpack.c.h.b16 %v192
    %v263 = vunpack.c.l.b16 %v193
    %v264 = vunpack.c.h.b16 %v193
    %v265 = vunpack.c.l.b16 %v194
    %v266 = vunpack.c.h.b16 %v194
    %v267 = vunpack.c.l.b16 %v195
    %v268 = vunpack.c.h.b16 %v195
    %v269 = vunpack.c.l.b16 %v196
    %v270 = vunpack.c.h.b16 %v196
    %v271 = vunpack.c.l.b16 %v197
    %v272 = vunpack.c.h.b16 %v197
    %v273 = vunpack.c.l.b16 %v198
    %v274 = vunpack.c.h.b16 %v198
    %v275 = vunpack.c.l.b16 %v199
    %v276 = vunpack.c.h.b16 %v199
    %v277 = vunpack.c.l.b16 %v200
    %v278 = vunpack.c.h.b16 %v200
    %v279 = vunpack.c.l.b16 %v201
    %v280 = vunpack.c.h.b16 %v201
    %v281 = vunpack.c.l.b16 %v202
    %v282 = vunpack.c.h.b16 %v202
    %v283 = vunpack.c.l.b16 %v203
    %v284 = vunpack.c.h.b16 %v203
    %v285 = vunpack.c.l.b16 %v204
    %v286 = vunpack.c.h.b16 %v204
    %v287 = vunpack.c.l.b16 %v205
    %v288 = vunpack.c.h.b16 %v205
    %v289 = vunpack.c.l.b16 %v206
    %v290 = vunpack.c.h.b16 %v206
    %v291 = vunpack.c.l.b16 %v207
    %v292 = vunpack.c.h.b16 %v207
    %v293 = vunpack.c.l.b16 %v208
    %v294 = vunpack.c.h.b16 %v208
    %v295 = vunpack.c.l.b16 %v209
    %v296 = vunpack.c.h.b16 %v209
    %v297 = vunpack.c.l.b16 %v210
    %v298 = vunpack.c.h.b16 %v210
    %v299 = vunpack.c.l.b16 %v211
    %v300 = vunpack.c.h.b16 %v211
    %v301 = vunpack.c.l.b16 %v212
    %v302 = vunpack.c.h.b16 %v212
    %v303 = vunpack.c.l.b16 %v213
    %v304 = vunpack.c.h.b16 %v213
    %v305 = vunpack.c.l.b16 %v214
    %v306 = vunpack.c.h.b16 %v214
    %v307 = vunpack.c.l.b16 %v215
    %v308 = vunpack.c.h.b16 %v215
    %v309 = vunpack.c.l.b16 %v216
    %v310 = vunpack.c.h.b16 %v216
    %v311 = vunpack.c.l.b16 %v217
    %v312 = vunpack.c.h.b16 %v217
    %v313 = vunpack.c.l.b16 %v218
    %v314 = vunpack.c.h.b16 %v218
    %v315 = vpack.c.b16 %v255, %v251
    %v316 = vpack.c.b16 %v256, %v252
    %v317 = vpack.c.b16 %v257, %v253
    %v318 = vpack.c.b16 %v258, %v254
    %v319 = vpack.c.b16 %v263, %v259
    %v320 = vpack.c.b16 %v264, %v260
    %v321 = vpack.c.b16 %v265, %v261
    %v322 = vpack.c.b16 %v266, %v262
    %v323 = vpack.c.b16 %v271, %v267
    %v324 = vpack.c.b16 %v272, %v268
    %v325 = vpack.c.b16 %v273, %v269
    %v326 = vpack.c.b16 %v274, %v270
    %v327 = vpack.c.b16 %v279, %v275
    %v328 = vpack.c.b16 %v280, %v276
    %v329 = vpack.c.b16 %v281, %v277
    %v330 = vpack.c.b16 %v282, %v278
    %v331 = vpack.c.b16 %v287, %v283
    %v332 = vpack.c.b16 %v288, %v284
    %v333 = vpack.c.b16 %v289, %v285
    %v334 = vpack.c.b16 %v290, %v286
    %v335 = vpack.c.b16 %v295, %v291
    %v336 = vpack.c.b16 %v296, %v292
    %v337 = vpack.c.b16 %v297, %v293
    %v338 = vpack.c.b16 %v298, %v294
    %v339 = vpack.c.b16 %v303, %v299
    %v340 = vpack.c.b16 %v304, %v300
    %v341 = vpack.c.b16 %v305, %v301
    %v342 = vpack.c.b16 %v306, %v302
    %v343 = vpack.c.b16 %v311, %v307
    %v344 = vpack.c.b16 %v312, %v308
    %v345 = vpack.c.b16 %v313, %v309
    %v346 = vpack.c.b16 %v314, %v310
    %379 = vmatpush.bf16.msra.mxu0 %v343
    %380 = vmatpush.bf16.msra.mxu0 %v339
    %381 = vmatpush.bf16.msra.mxu0 %v335
    %382 = vmatpush.bf16.msra.mxu0 %v331
    %383 = vmatpush.bf16.msra.mxu0 %v327
    %384 = vmatpush.bf16.msra.mxu0 %v323
    %385 = vmatpush.bf16.msra.mxu0 %v319
    %386 = vmatpush.bf16.msra.mxu0 %v315
    %387 = vmatmul.bf16.gmra.mxu0 %v186
    %v388 = vpop.f32.mrf.mxu0
    %v389 = vadd.f32 0.0, %v388
    %v390 = vpop.f32.mrf.mxu0
    %391 = vdwg.mxu0
    %392 = vmatpush.bf16.msra.mxu0 %v344
    %393 = vmatpush.bf16.msra.mxu0 %v340
    %394 = vmatpush.bf16.msra.mxu0 %v336
    %395 = vmatpush.bf16.msra.mxu0 %v332
    %396 = vmatpush.bf16.msra.mxu0 %v328
    %397 = vmatpush.bf16.msra.mxu0 %v324
    %398 = vmatpush.bf16.msra.mxu0 %v320
    %399 = vmatpush.bf16.msra.mxu0 %v316
    %400 = vmatmul.bf16.gmra.mxu0 %v186
    %v401 = vpop.f32.mrf.mxu0
    %v402 = vadd.f32 0.0, %v401
    %v403 = vpop.f32.mrf.mxu0
    %404 = vdwg.mxu0
    %405 = vmatpush.bf16.msra.mxu0 %v345
    %406 = vmatpush.bf16.msra.mxu0 %v341
    %407 = vmatpush.bf16.msra.mxu0 %v337
    %408 = vmatpush.bf16.msra.mxu0 %v333
    %409 = vmatpush.bf16.msra.mxu0 %v329
    %410 = vmatpush.bf16.msra.mxu0 %v325
    %411 = vmatpush.bf16.msra.mxu0 %v321
    %412 = vmatpush.bf16.msra.mxu0 %v317
    %413 = vmatmul.bf16.gmra.mxu0 %v186
    %v414 = vpop.f32.mrf.mxu0
    %v415 = vadd.f32 0.0, %v414
    %v416 = vpop.f32.mrf.mxu0
    %417 = vdwg.mxu0
    %418 = vmatpush.bf16.msra.mxu0 %v346
    %419 = vmatpush.bf16.msra.mxu0 %v342
    %420 = vmatpush.bf16.msra.mxu0 %v338
    %421 = vmatpush.bf16.msra.mxu0 %v334
    %422 = vmatpush.bf16.msra.mxu0 %v330
    %423 = vmatpush.bf16.msra.mxu0 %v326
    %424 = vmatpush.bf16.msra.mxu0 %v322
    %425 = vmatpush.bf16.msra.mxu0 %v318
    %426 = vmatmul.bf16.gmra.mxu0 %v186
    %v427 = vpop.f32.mrf.mxu0
    %v428 = vadd.f32 0.0, %v427
    %v429 = vpop.f32.mrf.mxu0
    %430 = vdwg.mxu0
    %v463 = vunpack.c.l.b16 %v154
    %v464 = vunpack.c.h.b16 %v154
    %v465 = vunpack.c.l.b16 %v155
    %v466 = vunpack.c.h.b16 %v155
    %v467 = vunpack.c.l.b16 %v156
    %v468 = vunpack.c.h.b16 %v156
    %v469 = vunpack.c.l.b16 %v157
    %v470 = vunpack.c.h.b16 %v157
    %v471 = vunpack.c.l.b16 %v158
    %v472 = vunpack.c.h.b16 %v158
    %v473 = vunpack.c.l.b16 %v159
    %v474 = vunpack.c.h.b16 %v159
    %v475 = vunpack.c.l.b16 %v160
    %v476 = vunpack.c.h.b16 %v160
    %v477 = vunpack.c.l.b16 %v161
    %v478 = vunpack.c.h.b16 %v161
    %v479 = vunpack.c.l.b16 %v162
    %v480 = vunpack.c.h.b16 %v162
    %v481 = vunpack.c.l.b16 %v163
    %v482 = vunpack.c.h.b16 %v163
    %v483 = vunpack.c.l.b16 %v164
    %v484 = vunpack.c.h.b16 %v164
    %v485 = vunpack.c.l.b16 %v165
    %v486 = vunpack.c.h.b16 %v165
    %v487 = vunpack.c.l.b16 %v166
    %v488 = vunpack.c.h.b16 %v166
    %v489 = vunpack.c.l.b16 %v167
    %v490 = vunpack.c.h.b16 %v167
    %v491 = vunpack.c.l.b16 %v168
    %v492 = vunpack.c.h.b16 %v168
    %v493 = vunpack.c.l.b16 %v169
    %v494 = vunpack.c.h.b16 %v169
    %v495 = vunpack.c.l.b16 %v170
    %v496 = vunpack.c.h.b16 %v170
    %v497 = vunpack.c.l.b16 %v171
    %v498 = vunpack.c.h.b16 %v171
    %v499 = vunpack.c.l.b16 %v172
    %v500 = vunpack.c.h.b16 %v172
    %v501 = vunpack.c.l.b16 %v173
    %v502 = vunpack.c.h.b16 %v173
    %v503 = vunpack.c.l.b16 %v174
    %v504 = vunpack.c.h.b16 %v174
    %v505 = vunpack.c.l.b16 %v175
    %v506 = vunpack.c.h.b16 %v175
    %v507 = vunpack.c.l.b16 %v176
    %v508 = vunpack.c.h.b16 %v176
    %v509 = vunpack.c.l.b16 %v177
    %v510 = vunpack.c.h.b16 %v177
    %v511 = vunpack.c.l.b16 %v178
    %v512 = vunpack.c.h.b16 %v178
    %v513 = vunpack.c.l.b16 %v179
    %v514 = vunpack.c.h.b16 %v179
    %v515 = vunpack.c.l.b16 %v180
    %v516 = vunpack.c.h.b16 %v180
    %v517 = vunpack.c.l.b16 %v181
    %v518 = vunpack.c.h.b16 %v181
    %v519 = vunpack.c.l.b16 %v182
    %v520 = vunpack.c.h.b16 %v182
    %v521 = vunpack.c.l.b16 %v183
    %v522 = vunpack.c.h.b16 %v183
    %v523 = vunpack.c.l.b16 %v184
    %v524 = vunpack.c.h.b16 %v184
    %v525 = vunpack.c.l.b16 %v185
    %v526 = vunpack.c.h.b16 %v185
    %v527 = vpack.c.b16 %v467, %v463
    %v528 = vpack.c.b16 %v468, %v464
    %v529 = vpack.c.b16 %v469, %v465
    %v530 = vpack.c.b16 %v470, %v466
    %v531 = vpack.c.b16 %v475, %v471
    %v532 = vpack.c.b16 %v476, %v472
    %v533 = vpack.c.b16 %v477, %v473
    %v534 = vpack.c.b16 %v478, %v474
    %v535 = vpack.c.b16 %v483, %v479
    %v536 = vpack.c.b16 %v484, %v480
    %v537 = vpack.c.b16 %v485, %v481
    %v538 = vpack.c.b16 %v486, %v482
    %v539 = vpack.c.b16 %v491, %v487
    %v540 = vpack.c.b16 %v492, %v488
    %v541 = vpack.c.b16 %v493, %v489
    %v542 = vpack.c.b16 %v494, %v490
    %v543 = vpack.c.b16 %v499, %v495
    %v544 = vpack.c.b16 %v500, %v496
    %v545 = vpack.c.b16 %v501, %v497
    %v546 = vpack.c.b16 %v502, %v498
    %v547 = vpack.c.b16 %v507, %v503
    %v548 = vpack.c.b16 %v508, %v504
    %v549 = vpack.c.b16 %v509, %v505
    %v550 = vpack.c.b16 %v510, %v506
    %v551 = vpack.c.b16 %v515, %v511
    %v552 = vpack.c.b16 %v516, %v512
    %v553 = vpack.c.b16 %v517, %v513
    %v554 = vpack.c.b16 %v518, %v514
    %v555 = vpack.c.b16 %v523, %v519
    %v556 = vpack.c.b16 %v524, %v520
    %v557 = vpack.c.b16 %v525, %v521
    %v558 = vpack.c.b16 %v526, %v522
    %591 = vmatpush.bf16.msra.mxu0 %v555
    %592 = vmatpush.bf16.msra.mxu0 %v551
    %593 = vmatpush.bf16.msra.mxu0 %v547
    %594 = vmatpush.bf16.msra.mxu0 %v543
    %595 = vmatpush.bf16.msra.mxu0 %v539
    %596 = vmatpush.bf16.msra.mxu0 %v535
    %597 = vmatpush.bf16.msra.mxu0 %v531
    %598 = vmatpush.bf16.msra.mxu0 %v527
    %599 = vmatmul.bf16.gmra.mxu0 %v153
    %v600 = vpop.f32.mrf.mxu0
    %v601 = vadd.f32 %v389, %v600
    %v602 = vpop.f32.mrf.mxu0
    %603 = vdwg.mxu0
    %604 = vmatpush.bf16.msra.mxu0 %v556
    %605 = vmatpush.bf16.msra.mxu0 %v552
    %606 = vmatpush.bf16.msra.mxu0 %v548
    %607 = vmatpush.bf16.msra.mxu0 %v544
    %608 = vmatpush.bf16.msra.mxu0 %v540
    %609 = vmatpush.bf16.msra.mxu0 %v536
    %610 = vmatpush.bf16.msra.mxu0 %v532
    %611 = vmatpush.bf16.msra.mxu0 %v528
    %612 = vmatmul.bf16.gmra.mxu0 %v153
    %v613 = vpop.f32.mrf.mxu0
    %v614 = vadd.f32 %v402, %v613
    %v615 = vpop.f32.mrf.mxu0
    %616 = vdwg.mxu0
    %617 = vmatpush.bf16.msra.mxu0 %v557
    %618 = vmatpush.bf16.msra.mxu0 %v553
    %619 = vmatpush.bf16.msra.mxu0 %v549
    %620 = vmatpush.bf16.msra.mxu0 %v545
    %621 = vmatpush.bf16.msra.mxu0 %v541
    %622 = vmatpush.bf16.msra.mxu0 %v537
    %623 = vmatpush.bf16.msra.mxu0 %v533
    %624 = vmatpush.bf16.msra.mxu0 %v529
    %625 = vmatmul.bf16.gmra.mxu0 %v153
    %v626 = vpop.f32.mrf.mxu0
    %v627 = vadd.f32 %v415, %v626
    %v628 = vpop.f32.mrf.mxu0
    %629 = vdwg.mxu0
    %630 = vmatpush.bf16.msra.mxu0 %v558
    %631 = vmatpush.bf16.msra.mxu0 %v554
    %632 = vmatpush.bf16.msra.mxu0 %v550
    %633 = vmatpush.bf16.msra.mxu0 %v546
    %634 = vmatpush.bf16.msra.mxu0 %v542
    %635 = vmatpush.bf16.msra.mxu0 %v538
    %636 = vmatpush.bf16.msra.mxu0 %v534
    %637 = vmatpush.bf16.msra.mxu0 %v530
    %638 = vmatmul.bf16.gmra.mxu0 %v153
    %v639 = vpop.f32.mrf.mxu0
    %v640 = vadd.f32 %v428, %v639
    %v641 = vpop.f32.mrf.mxu0
    %642 = vdwg.mxu0
    %v643 = vld [vmem:[%s6] sm:$0xf]
    %v645 = vperm.slane %v643, 0
    %v646 = vperm.slane %v643, 1
    %v647 = vperm.slane %v643, 2
    %v648 = vperm.slane %v643, 3
    %v653 = vadd.f32 %v601, %v645
    %v654 = vadd.f32 %v614, %v646
    %v655 = vadd.f32 %v627, %v647
    %v656 = vadd.f32 %v640, %v648
    %v657 = vadd.f32 %v654, %v114
    %v658 = vmax.f32 %v657, %v653
    %v659 = vsub.f32 %v653, %v658
    %v660 = vmul.f32 %v659, 1.442695
    %v661 = vpow.pop %v660
    %v662 = vsub.f32 %v654, %v658
    %v663 = vadd.f32 %v662, %v114
    %v664 = vmul.f32 %v663, 1.442695
    %v665 = vpow.pop %v664
    %v666 = vtanh.pop %v655
    %v667 = vxor.u32 %v656, 2147483648
    %v668 = vmul.f32 %v667, 1.442695
    %v669 = vpow.pop %v668
    %v670 = vadd.f32 %v669, 1.0
    %v671 = vrcp.pop %v670
    %v672 = vmul.f32 %v670, %v671
    %v673 = vsub.f32 1.0, %v672
    %v674 = vmul.f32 %v671, %v673
    %v675 = vadd.f32 %v671, %v674
    %vm676 = vweird.f32 %v670
    %vm677 = vweird.f32 %v671
    %vm678 = vmor %vm676, %vm677
    %v679 = vsel %vm678, %v671, %v675
    %v680 = vand.u32 2147483647, %v670
    %vm681 = vcmp.eq.f32.partialorder %v680, 8.507059e+37
    %v682 = vand.u32 %v670, 2147483648
    %v683 = vor.u32 1.1754944e-38, %v682
    %v684 = vsel %vm681, %v683, %v679
    %v685 = vmul.f32 1.0, %v684
    %v686 = vmul.f32 %v665, %v111
    %v687 = vmul.f32 %v661, %v666
    %v688 = vadd.f32 %v686, %v687
    %v689 = vmul.f32 %v665, %v112
    %v690 = vadd.f32 %v689, %v661
    %v691 = vrcp.pop %v690
    %v692 = vmul.f32 %v690, %v691
    %v693 = vsub.f32 1.0, %v692
    %v694 = vmul.f32 %v691, %v693
    %v695 = vadd.f32 %v691, %v694
    %vm696 = vweird.f32 %v690
    %vm697 = vweird.f32 %v691
    %vm698 = vmor %vm696, %vm697
    %v699 = vsel %vm698, %v691, %v695
    %v700 = vand.u32 2147483647, %v690
    %vm701 = vcmp.eq.f32.partialorder %v700, 8.507059e+37
    %v702 = vand.u32 %v690, 2147483648
    %v703 = vor.u32 1.1754944e-38, %v702
    %v704 = vsel %vm701, %v703, %v699
    %v705 = vmul.f32 %v688, %v704
    %v706 = vmul.f32 %v685, %v705
    %v707 = vld [vmem:[%s9] sm:$0xff]
    %v708 = vld [vmem:[%s9 + $0x8] sm:$0xff]
    %v709 = vld [vmem:[%s9 + $0x10] sm:$0xff]
    %v710 = vld [vmem:[%s9 + $0x18] sm:$0xff]
    %v711 = vld [vmem:[%s9 + $0x20] sm:$0xff]
    %v712 = vld [vmem:[%s9 + $0x28] sm:$0xff]
    %v713 = vld [vmem:[%s9 + $0x30] sm:$0xff]
    %v714 = vld [vmem:[%s9 + $0x38] sm:$0xff]
    %v715 = vld [vmem:[%s9 + $0x40] sm:$0xff]
    %v716 = vld [vmem:[%s9 + $0x48] sm:$0xff]
    %v717 = vld [vmem:[%s9 + $0x50] sm:$0xff]
    %v718 = vld [vmem:[%s9 + $0x58] sm:$0xff]
    %v719 = vld [vmem:[%s9 + $0x60] sm:$0xff]
    %v720 = vld [vmem:[%s9 + $0x68] sm:$0xff]
    %v721 = vld [vmem:[%s9 + $0x70] sm:$0xff]
    %v722 = vld [vmem:[%s9 + $0x78] sm:$0xff]
    %723 = vmatpush.msra.mxu0 %v722
    %724 = vmatpush.msra.mxu0 %v721
    %725 = vmatpush.msra.mxu0 %v720
    %726 = vmatpush.msra.mxu0 %v719
    %727 = vmatpush.msra.mxu0 %v718
    %728 = vmatpush.msra.mxu0 %v717
    %729 = vmatpush.msra.mxu0 %v716
    %730 = vmatpush.msra.mxu0 %v715
    %731 = vmatpush.msra.mxu0 %v714
    %732 = vmatpush.msra.mxu0 %v713
    %733 = vmatpush.msra.mxu0 %v712
    %734 = vmatpush.msra.mxu0 %v711
    %735 = vmatpush.msra.mxu0 %v710
    %736 = vmatpush.msra.mxu0 %v709
    %737 = vmatpush.msra.mxu0 %v708
    %738 = vmatpush.msra.mxu0 %v707
    %739 = vmatmul.f32.gmra.mxu0 %v706
    %v740 = vpop.f32.mrf.mxu0
    %v741 = vadd.f32 0.0, %v740
    %742 = vdwg.mxu0
    %v743 = vmul.f32 %v741, 0.03125
    %v744 = vld [vmem:[%s10] sm:$0xf]
    %vm745 = vcmask 31744
    %v747 = vsel %vm745, %v743, 0
    %vm749 = vcmask 1043456
    %v751 = vsel %vm749, %v744, 0
    %753 = vmatpush.msra.mxu0 0.0
    %754 = vmatpush.msra.mxu0 0.0
    %755 = vmatpush.msra.mxu0 0.0
    %756 = vmatpush.msra.mxu0 0.0
    %757 = vmatpush.msra.mxu0 0.0
    %758 = vmatpush.msra.mxu0 0.0
    %759 = vmatpush.msra.mxu0 0.0
    %760 = vmatpush.msra.mxu0 0.0
    %761 = vmatpush.msra.mxu0 0.0
    %762 = vmatpush.msra.mxu0 0.0
    %763 = vmatpush.msra.mxu0 0.0
    %764 = vmatpush.msra.mxu0 0.0
    %765 = vmatpush.msra.mxu0 0.0
    %766 = vmatpush.msra.mxu0 0.0
    %767 = vmatpush.msra.mxu0 0.0
    %768 = vmatpush.msra.mxu0 %v751
    %769 = vmatmul.f32.gmra.mxu0 %v747
    %v770 = vpop.f32.mrf.mxu0
    %v771 = vadd.f32 0.0, %v770
    %772 = vdwg.mxu0
    %v773 = vsub.f32 %v706, %v771
    %v774 = vmul.f32 %v773, %v773
    %775 = vmatpush.msra.mxu0 %v722
    %776 = vmatpush.msra.mxu0 %v721
    %777 = vmatpush.msra.mxu0 %v720
    %778 = vmatpush.msra.mxu0 %v719
    %779 = vmatpush.msra.mxu0 %v718
    %780 = vmatpush.msra.mxu0 %v717
    %781 = vmatpush.msra.mxu0 %v716
    %782 = vmatpush.msra.mxu0 %v715
    %783 = vmatpush.msra.mxu0 %v714
    %784 = vmatpush.msra.mxu0 %v713
    %785 = vmatpush.msra.mxu0 %v712
    %786 = vmatpush.msra.mxu0 %v711
    %787 = vmatpush.msra.mxu0 %v710
    %788 = vmatpush.msra.mxu0 %v709
    %789 = vmatpush.msra.mxu0 %v708
    %790 = vmatpush.msra.mxu0 %v707
    %791 = vmatmul.f32.gmra.mxu0 %v774
    %v792 = vpop.f32.mrf.mxu0
    %v793 = vadd.f32 0.0, %v792
    %794 = vdwg.mxu0
    %v795 = vmul.f32 %v793, 0.03125
    %v797 = vsel %vm745, %v795, 0
    %799 = vmatpush.msra.mxu0 0.0
    %800 = vmatpush.msra.mxu0 0.0
    %801 = vmatpush.msra.mxu0 0.0
    %802 = vmatpush.msra.mxu0 0.0
    %803 = vmatpush.msra.mxu0 0.0
    %804 = vmatpush.msra.mxu0 0.0
    %805 = vmatpush.msra.mxu0 0.0
    %806 = vmatpush.msra.mxu0 0.0
    %807 = vmatpush.msra.mxu0 0.0
    %808 = vmatpush.msra.mxu0 0.0
    %809 = vmatpush.msra.mxu0 0.0
    %810 = vmatpush.msra.mxu0 0.0
    %811 = vmatpush.msra.mxu0 0.0
    %812 = vmatpush.msra.mxu0 0.0
    %813 = vmatpush.msra.mxu0 0.0
    %814 = vmatpush.msra.mxu0 %v751
    %815 = vmatmul.f32.gmra.mxu0 %v797
    %v816 = vpop.f32.mrf.mxu0
    %v817 = vadd.f32 1e-05, %v816
    %818 = vdwg.mxu0
    %v819 = vrsqrt.pop %v817
    %v820 = vmul.f32 %v819, %v817
    %v821 = vmul.f32 %v820, %v819
    %v822 = vmul.f32 0.5, %v821
    %v823 = vsub.f32 1.5, %v822
    %v824 = vmul.f32 %v819, %v823
    %vm825 = vweird.f32 %v817
    %vm826 = vweird.f32 %v819
    %vm827 = vmor %vm825, %vm826
    %v828 = vsel %vm827, %v819, %v824
    %v829 = vmul.f32 %v773, %v828
    %v830 = vld [vmem:[%s7] sm:$0x1]
    %v832 = vperm.slane %v830, 0
    %v834 = vmul.f32 %v829, %v832
    %v835 = vld [vmem:[%s8] sm:$0x1]
    %v837 = vperm.slane %v835, 0
    %v839 = vadd.f32 %v834, %v837
    %v840 = vpack.c.bf16 %v839, %v839
    %v841 = vld [vmem:[#allocation7] sm:$0xff]
    %v842 = vld [vmem:[#allocation7 + $0x8] sm:$0xff]
    %v843 = vld [vmem:[#allocation7 + $0x10] sm:$0xff]
    %v844 = vld [vmem:[#allocation7 + $0x18] sm:$0xff]
    %v845 = vld [vmem:[#allocation7 + $0x20] sm:$0xff]
    %v846 = vld [vmem:[#allocation7 + $0x28] sm:$0xff]
    %v847 = vld [vmem:[#allocation7 + $0x30] sm:$0xff]
    %v848 = vld [vmem:[#allocation7 + $0x38] sm:$0xff]
    %v849 = vld [vmem:[#allocation7 + $0x40] sm:$0xff]
    %v850 = vld [vmem:[#allocation7 + $0x48] sm:$0xff]
    %v851 = vld [vmem:[#allocation7 + $0x50] sm:$0xff]
    %v852 = vld [vmem:[#allocation7 + $0x58] sm:$0xff]
    %v853 = vld [vmem:[#allocation7 + $0x60] sm:$0xff]
    %v854 = vld [vmem:[#allocation7 + $0x68] sm:$0xff]
    %v855 = vld [vmem:[#allocation7 + $0x70] sm:$0xff]
    %v856 = vld [vmem:[#allocation7 + $0x78] sm:$0xff]
    %v857 = vld [vmem:[#allocation7 + $0x80] sm:$0xff]
    %v858 = vld [vmem:[#allocation7 + $0x88] sm:$0xff]
    %v859 = vld [vmem:[#allocation7 + $0x90] sm:$0xff]
    %v860 = vld [vmem:[#allocation7 + $0x98] sm:$0xff]
    %v861 = vld [vmem:[#allocation7 + $0xa0] sm:$0xff]
    %v862 = vld [vmem:[#allocation7 + $0xa8] sm:$0xff]
    %v863 = vld [vmem:[#allocation7 + $0xb0] sm:$0xff]
    %v864 = vld [vmem:[#allocation7 + $0xb8] sm:$0xff]
    %v865 = vld [vmem:[#allocation7 + $0xc0] sm:$0xff]
    %v866 = vld [vmem:[#allocation7 + $0xc8] sm:$0xff]
    %v867 = vld [vmem:[#allocation7 + $0xd0] sm:$0xff]
    %v868 = vld [vmem:[#allocation7 + $0xd8] sm:$0xff]
    %v869 = vld [vmem:[#allocation7 + $0xe0] sm:$0xff]
    %v870 = vld [vmem:[#allocation7 + $0xe8] sm:$0xff]
    %v871 = vld [vmem:[#allocation7 + $0xf0] sm:$0xff]
    %v872 = vld [vmem:[#allocation7 + $0xf8] sm:$0xff]
    %v873 = vld [vmem:[%s12] sm:$0xf]
    %v875 = vperm.slane %v873, 0
    %v876 = vperm.slane %v873, 1
    %v877 = vperm.slane %v873, 2
    %v878 = vperm.slane %v873, 3
    %v915 = vunpack.c.l.b16 %v841
    %v916 = vunpack.c.h.b16 %v841
    %v917 = vunpack.c.l.b16 %v842
    %v918 = vunpack.c.h.b16 %v842
    %v919 = vunpack.c.l.b16 %v843
    %v920 = vunpack.c.h.b16 %v843
    %v921 = vunpack.c.l.b16 %v844
    %v922 = vunpack.c.h.b16 %v844
    %v923 = vunpack.c.l.b16 %v845
    %v924 = vunpack.c.h.b16 %v845
    %v925 = vunpack.c.l.b16 %v846
    %v926 = vunpack.c.h.b16 %v846
    %v927 = vunpack.c.l.b16 %v847
    %v928 = vunpack.c.h.b16 %v847
    %v929 = vunpack.c.l.b16 %v848
    %v930 = vunpack.c.h.b16 %v848
    %v931 = vunpack.c.l.b16 %v849
    %v932 = vunpack.c.h.b16 %v849
    %v933 = vunpack.c.l.b16 %v850
    %v934 = vunpack.c.h.b16 %v850
    %v935 = vunpack.c.l.b16 %v851
    %v936 = vunpack.c.h.b16 %v851
    %v937 = vunpack.c.l.b16 %v852
    %v938 = vunpack.c.h.b16 %v852
    %v939 = vunpack.c.l.b16 %v853
    %v940 = vunpack.c.h.b16 %v853
    %v941 = vunpack.c.l.b16 %v854
    %v942 = vunpack.c.h.b16 %v854
    %v943 = vunpack.c.l.b16 %v855
    %v944 = vunpack.c.h.b16 %v855
    %v945 = vunpack.c.l.b16 %v856
    %v946 = vunpack.c.h.b16 %v856
    %v947 = vunpack.c.l.b16 %v857
    %v948 = vunpack.c.h.b16 %v857
    %v949 = vunpack.c.l.b16 %v858
    %v950 = vunpack.c.h.b16 %v858
    %v951 = vunpack.c.l.b16 %v859
    %v952 = vunpack.c.h.b16 %v859
    %v953 = vunpack.c.l.b16 %v860
    %v954 = vunpack.c.h.b16 %v860
    %v955 = vunpack.c.l.b16 %v861
    %v956 = vunpack.c.h.b16 %v861
    %v957 = vunpack.c.l.b16 %v862
    %v958 = vunpack.c.h.b16 %v862
    %v959 = vunpack.c.l.b16 %v863
    %v960 = vunpack.c.h.b16 %v863
    %v961 = vunpack.c.l.b16 %v864
    %v962 = vunpack.c.h.b16 %v864
    %v963 = vunpack.c.l.b16 %v865
    %v964 = vunpack.c.h.b16 %v865
    %v965 = vunpack.c.l.b16 %v866
    %v966 = vunpack.c.h.b16 %v866
    %v967 = vunpack.c.l.b16 %v867
    %v968 = vunpack.c.h.b16 %v867
    %v969 = vunpack.c.l.b16 %v868
    %v970 = vunpack.c.h.b16 %v868
    %v971 = vunpack.c.l.b16 %v869
    %v972 = vunpack.c.h.b16 %v869
    %v973 = vunpack.c.l.b16 %v870
    %v974 = vunpack.c.h.b16 %v870
    %v975 = vunpack.c.l.b16 %v871
    %v976 = vunpack.c.h.b16 %v871
    %v977 = vunpack.c.l.b16 %v872
    %v978 = vunpack.c.h.b16 %v872
    %v979 = vpack.c.b16 %v919, %v915
    %v980 = vpack.c.b16 %v920, %v916
    %v981 = vpack.c.b16 %v921, %v917
    %v982 = vpack.c.b16 %v922, %v918
    %v983 = vpack.c.b16 %v927, %v923
    %v984 = vpack.c.b16 %v928, %v924
    %v985 = vpack.c.b16 %v929, %v925
    %v986 = vpack.c.b16 %v930, %v926
    %v987 = vpack.c.b16 %v935, %v931
    %v988 = vpack.c.b16 %v936, %v932
    %v989 = vpack.c.b16 %v937, %v933
    %v990 = vpack.c.b16 %v938, %v934
    %v991 = vpack.c.b16 %v943, %v939
    %v992 = vpack.c.b16 %v944, %v940
    %v993 = vpack.c.b16 %v945, %v941
    %v994 = vpack.c.b16 %v946, %v942
    %v995 = vpack.c.b16 %v951, %v947
    %v996 = vpack.c.b16 %v952, %v948
    %v997 = vpack.c.b16 %v953, %v949
    %v998 = vpack.c.b16 %v954, %v950
    %v999 = vpack.c.b16 %v959, %v955
    %v1000 = vpack.c.b16 %v960, %v956
    %v1001 = vpack.c.b16 %v961, %v957
    %v1002 = vpack.c.b16 %v962, %v958
    %v1003 = vpack.c.b16 %v967, %v963
    %v1004 = vpack.c.b16 %v968, %v964
    %v1005 = vpack.c.b16 %v969, %v965
    %v1006 = vpack.c.b16 %v970, %v966
    %v1007 = vpack.c.b16 %v975, %v971
    %v1008 = vpack.c.b16 %v976, %v972
    %v1009 = vpack.c.b16 %v977, %v973
    %v1010 = vpack.c.b16 %v978, %v974
    %1043 = vmatpush.bf16.msra.mxu0 %v1007
    %1044 = vmatpush.bf16.msra.mxu0 %v1003
    %1045 = vmatpush.bf16.msra.mxu0 %v999
    %1046 = vmatpush.bf16.msra.mxu0 %v995
    %1047 = vmatpush.bf16.msra.mxu0 %v991
    %1048 = vmatpush.bf16.msra.mxu0 %v987
    %1049 = vmatpush.bf16.msra.mxu0 %v983
    %1050 = vmatpush.bf16.msra.mxu0 %v979
    %1051 = vmatmul.bf16.gmra.mxu0 %v840
    %v1052 = vpop.f32.mrf.mxu0
    %v1053 = vadd.f32 %v875, %v1052
    %v1054 = vpop.f32.mrf.mxu0
    %1055 = vdwg.mxu0
    %1056 = vmatpush.bf16.msra.mxu0 %v1008
    %1057 = vmatpush.bf16.msra.mxu0 %v1004
    %1058 = vmatpush.bf16.msra.mxu0 %v1000
    %1059 = vmatpush.bf16.msra.mxu0 %v996
    %1060 = vmatpush.bf16.msra.mxu0 %v992
    %1061 = vmatpush.bf16.msra.mxu0 %v988
    %1062 = vmatpush.bf16.msra.mxu0 %v984
    %1063 = vmatpush.bf16.msra.mxu0 %v980
    %1064 = vmatmul.bf16.gmra.mxu0 %v840
    %v1065 = vpop.f32.mrf.mxu0
    %v1066 = vadd.f32 %v876, %v1065
    %v1067 = vpop.f32.mrf.mxu0
    %1068 = vdwg.mxu0
    %1069 = vmatpush.bf16.msra.mxu0 %v1009
    %1070 = vmatpush.bf16.msra.mxu0 %v1005
    %1071 = vmatpush.bf16.msra.mxu0 %v1001
    %1072 = vmatpush.bf16.msra.mxu0 %v997
    %1073 = vmatpush.bf16.msra.mxu0 %v993
    %1074 = vmatpush.bf16.msra.mxu0 %v989
    %1075 = vmatpush.bf16.msra.mxu0 %v985
    %1076 = vmatpush.bf16.msra.mxu0 %v981
    %1077 = vmatmul.bf16.gmra.mxu0 %v840
    %v1078 = vpop.f32.mrf.mxu0
    %v1079 = vadd.f32 %v877, %v1078
    %v1080 = vpop.f32.mrf.mxu0
    %1081 = vdwg.mxu0
    %1082 = vmatpush.bf16.msra.mxu0 %v1010
    %1083 = vmatpush.bf16.msra.mxu0 %v1006
    %1084 = vmatpush.bf16.msra.mxu0 %v1002
    %1085 = vmatpush.bf16.msra.mxu0 %v998
    %1086 = vmatpush.bf16.msra.mxu0 %v994
    %1087 = vmatpush.bf16.msra.mxu0 %v990
    %1088 = vmatpush.bf16.msra.mxu0 %v986
    %1089 = vmatpush.bf16.msra.mxu0 %v982
    %1090 = vmatmul.bf16.gmra.mxu0 %v840
    %v1091 = vpop.f32.mrf.mxu0
    %v1092 = vadd.f32 %v878, %v1091
    %v1093 = vpop.f32.mrf.mxu0
    %1094 = vdwg.mxu0
    %v1095 = vmul.f32 %v1079, 0.5
    %v1096 = vmul.f32 %v1092, 0.5
    %v1097 = vmul.f32 %v1079, 0.70710677
    %v1098 = vmul.f32 %v1092, 0.70710677
    %v1099 = vand.u32 2147483647, %v1097
    %v1100 = vand.u32 2147483647, %v1098
    %v1101 = vmul.f32 %v1099, 0.3275911
    %v1102 = vmul.f32 %v1100, 0.3275911
    %v1103 = vadd.f32 %v1101, 1.0
    %v1104 = vadd.f32 %v1102, 1.0
    %v1105 = vrcp.pop %v1103
    %v1106 = vmul.f32 %v1103, %v1105
    %v1107 = vsub.f32 1.0, %v1106
    %v1108 = vmul.f32 %v1105, %v1107
    %v1109 = vadd.f32 %v1105, %v1108
    %vm1110 = vweird.f32 %v1103
    %vm1111 = vweird.f32 %v1105
    %vm1112 = vmor %vm1110, %vm1111
    %v1113 = vsel %vm1112, %v1105, %v1109
    %v1114 = vand.u32 2147483647, %v1103
    %vm1115 = vcmp.eq.f32.partialorder %v1114, 8.507059e+37
    %v1116 = vand.u32 %v1103, 2147483648
    %v1117 = vor.u32 1.1754944e-38, %v1116
    %v1118 = vsel %vm1115, %v1117, %v1113
    %v1119 = vmul.f32 1.0, %v1118
    %v1120 = vrcp.pop %v1104
    %v1121 = vmul.f32 %v1104, %v1120
    %v1122 = vsub.f32 1.0, %v1121
    %v1123 = vmul.f32 %v1120, %v1122
    %v1124 = vadd.f32 %v1120, %v1123
    %vm1125 = vweird.f32 %v1104
    %vm1126 = vweird.f32 %v1120
    %vm1127 = vmor %vm1125, %vm1126
    %v1128 = vsel %vm1127, %v1120, %v1124
    %v1129 = vand.u32 2147483647, %v1104
    %vm1130 = vcmp.eq.f32.partialorder %v1129, 8.507059e+37
    %v1131 = vand.u32 %v1104, 2147483648
    %v1132 = vor.u32 1.1754944e-38, %v1131
    %v1133 = vsel %vm1130, %v1132, %v1128
    %v1134 = vmul.f32 1.0, %v1133
    %v1135 = vmul.f32 %v1119, 1.0614054
    %v1136 = vmul.f32 %v1134, 1.0614054
    %v1137 = vadd.f32 %v1135, -1.4531521
    %v1138 = vadd.f32 %v1136, -1.4531521
    %v1139 = vmul.f32 %v1137, %v1119
    %v1140 = vmul.f32 %v1138, %v1134
    %v1141 = vadd.f32 %v1139, 1.4214138
    %v1142 = vadd.f32 %v1140, 1.4214138
    %v1143 = vmul.f32 %v1141, %v1119
    %v1144 = vmul.f32 %v1142, %v1134
    %v1145 = vadd.f32 %v1143, -0.28449672
    %v1146 = vadd.f32 %v1144, -0.28449672
    %v1147 = vmul.f32 %v1145, %v1119
    %v1148 = vmul.f32 %v1146, %v1134
    %v1149 = vadd.f32 %v1147, 0.2548296
    %v1150 = vadd.f32 %v1148, 0.2548296
    %v1151 = vmul.f32 %v1149, %v1119
    %v1152 = vmul.f32 %v1150, %v1134
    %v1153 = vsub.f32 0.0, %v1099
    %v1154 = vsub.f32 0.0, %v1100
    %v1155 = vmul.f32 %v1153, %v1099
    %v1156 = vmul.f32 %v1154, %v1100
    %v1157 = vmul.f32 %v1155, 1.442695
    %v1158 = vpow.pop %v1157
    %v1159 = vmul.f32 %v1156, 1.442695
    %v1160 = vpow.pop %v1159
    %v1161 = vmul.f32 %v1151, %v1158
    %v1162 = vmul.f32 %v1152, %v1160
    %v1163 = vsub.f32 1.0, %v1161
    %v1164 = vsub.f32 1.0, %v1162
    %vm1165 = vcmp.lt.f32.partialorder %v1097, 0.0
    %vm1166 = vcmp.lt.f32.partialorder %v1098, 0.0
    %v1167 = vsub.f32 0.0, %v1163
    %v1168 = vsub.f32 0.0, %v1164
    %v1169 = vsel %vm1165, %v1167, %v1163
    %v1170 = vsel %vm1166, %v1168, %v1164
    %v1171 = vadd.f32 %v1169, 1.0
    %v1172 = vadd.f32 %v1170, 1.0
    %v1173 = vmul.f32 %v1095, %v1171
    %v1174 = vmul.f32 %v1096, %v1172
    %v1175 = vadd.f32 %v1053, %v1173
    %v1176 = vadd.f32 %v1066, %v1174
    %v1177 = vpack.c.bf16 %v1175, %v1175
    %v1178 = vpack.c.bf16 %v1176, %v1176
    %v1179 = vld [vmem:[%s13] sm:$0xf]
    %v1180 = vld [vmem:[%s13 + $0x4] sm:$0xf]
    %v1181 = vld [vmem:[%s13 + $0x8] sm:$0xf]
    %v1182 = vld [vmem:[%s13 + $0xc] sm:$0xf]
    %v1183 = vld [vmem:[%s13 + $0x10] sm:$0xf]
    %v1184 = vld [vmem:[%s13 + $0x14] sm:$0xf]
    %v1185 = vld [vmem:[%s13 + $0x18] sm:$0xf]
    %v1186 = vld [vmem:[%s13 + $0x1c] sm:$0xf]
    %v1187 = vld [vmem:[%s13 + $0x20] sm:$0xf]
    %v1188 = vld [vmem:[%s13 + $0x24] sm:$0xf]
    %v1189 = vld [vmem:[%s13 + $0x28] sm:$0xf]
    %v1190 = vld [vmem:[%s13 + $0x2c] sm:$0xf]
    %v1191 = vld [vmem:[%s13 + $0x30] sm:$0xf]
    %v1192 = vld [vmem:[%s13 + $0x34] sm:$0xf]
    %v1193 = vld [vmem:[%s13 + $0x38] sm:$0xf]
    %v1194 = vld [vmem:[%s13 + $0x3c] sm:$0xf]
    %v1195 = vld [vmem:[%s13 + $0x40] sm:$0xf]
    %v1196 = vld [vmem:[%s13 + $0x44] sm:$0xf]
    %v1197 = vld [vmem:[%s13 + $0x48] sm:$0xf]
    %v1198 = vld [vmem:[%s13 + $0x4c] sm:$0xf]
    %v1199 = vld [vmem:[%s13 + $0x50] sm:$0xf]
    %v1200 = vld [vmem:[%s13 + $0x54] sm:$0xf]
    %v1201 = vld [vmem:[%s13 + $0x58] sm:$0xf]
    %v1202 = vld [vmem:[%s13 + $0x5c] sm:$0xf]
    %v1203 = vld [vmem:[%s13 + $0x60] sm:$0xf]
    %v1204 = vld [vmem:[%s13 + $0x64] sm:$0xf]
    %v1205 = vld [vmem:[%s13 + $0x68] sm:$0xf]
    %v1206 = vld [vmem:[%s13 + $0x6c] sm:$0xf]
    %v1207 = vld [vmem:[%s13 + $0x70] sm:$0xf]
    %v1208 = vld [vmem:[%s13 + $0x74] sm:$0xf]
    %v1209 = vld [vmem:[%s13 + $0x78] sm:$0xf]
    %v1210 = vld [vmem:[%s13 + $0x7c] sm:$0xf]
    %v1211 = vld [vmem:[%s14] sm:$0x1]
    %v1213 = vperm.slane %v1211, 0
    %v1247 = vunpack.c.l.b16 %v1179
    %v1248 = vunpack.c.l.b16 %v1180
    %v1249 = vunpack.c.l.b16 %v1181
    %v1250 = vunpack.c.l.b16 %v1182
    %v1251 = vunpack.c.l.b16 %v1183
    %v1252 = vunpack.c.l.b16 %v1184
    %v1253 = vunpack.c.l.b16 %v1185
    %v1254 = vunpack.c.l.b16 %v1186
    %v1255 = vunpack.c.l.b16 %v1187
    %v1256 = vunpack.c.l.b16 %v1188
    %v1257 = vunpack.c.l.b16 %v1189
    %v1258 = vunpack.c.l.b16 %v1190
    %v1259 = vunpack.c.l.b16 %v1191
    %v1260 = vunpack.c.l.b16 %v1192
    %v1261 = vunpack.c.l.b16 %v1193
    %v1262 = vunpack.c.l.b16 %v1194
    %v1263 = vunpack.c.l.b16 %v1195
    %v1264 = vunpack.c.l.b16 %v1196
    %v1265 = vunpack.c.l.b16 %v1197
    %v1266 = vunpack.c.l.b16 %v1198
    %v1267 = vunpack.c.l.b16 %v1199
    %v1268 = vunpack.c.l.b16 %v1200
    %v1269 = vunpack.c.l.b16 %v1201
    %v1270 = vunpack.c.l.b16 %v1202
    %v1271 = vunpack.c.l.b16 %v1203
    %v1272 = vunpack.c.l.b16 %v1204
    %v1273 = vunpack.c.l.b16 %v1205
    %v1274 = vunpack.c.l.b16 %v1206
    %v1275 = vunpack.c.l.b16 %v1207
    %v1276 = vunpack.c.l.b16 %v1208
    %v1277 = vunpack.c.l.b16 %v1209
    %v1278 = vunpack.c.l.b16 %v1210
    %v1279 = vpack.c.b16 %v1248, %v1247
    %v1280 = vpack.c.b16 %v1250, %v1249
    %v1281 = vpack.c.b16 %v1252, %v1251
    %v1282 = vpack.c.b16 %v1254, %v1253
    %v1283 = vpack.c.b16 %v1256, %v1255
    %v1284 = vpack.c.b16 %v1258, %v1257
    %v1285 = vpack.c.b16 %v1260, %v1259
    %v1286 = vpack.c.b16 %v1262, %v1261
    %v1287 = vpack.c.b16 %v1264, %v1263
    %v1288 = vpack.c.b16 %v1266, %v1265
    %v1289 = vpack.c.b16 %v1268, %v1267
    %v1290 = vpack.c.b16 %v1270, %v1269
    %v1291 = vpack.c.b16 %v1272, %v1271
    %v1292 = vpack.c.b16 %v1274, %v1273
    %v1293 = vpack.c.b16 %v1276, %v1275
    %v1294 = vpack.c.b16 %v1278, %v1277
    %1311 = vmatpush.bf16.msra.mxu0 %v1286
    %1312 = vmatpush.bf16.msra.mxu0 %v1285
    %1313 = vmatpush.bf16.msra.mxu0 %v1284
    %1314 = vmatpush.bf16.msra.mxu0 %v1283
    %1315 = vmatpush.bf16.msra.mxu0 %v1282
    %1316 = vmatpush.bf16.msra.mxu0 %v1281
    %1317 = vmatpush.bf16.msra.mxu0 %v1280
    %1318 = vmatpush.bf16.msra.mxu0 %v1279
    %1319 = vmatmul.bf16.gmra.mxu0 %v1177
    %v1320 = vpop.f32.mrf.mxu0
    %v1321 = vadd.f32 %v1213, %v1320
    %v1322 = vpop.f32.mrf.mxu0
    %1323 = vdwg.mxu0
    %1324 = vmatpush.bf16.msra.mxu0 %v1294
    %1325 = vmatpush.bf16.msra.mxu0 %v1293
    %1326 = vmatpush.bf16.msra.mxu0 %v1292
    %1327 = vmatpush.bf16.msra.mxu0 %v1291
    %1328 = vmatpush.bf16.msra.mxu0 %v1290
    %1329 = vmatpush.bf16.msra.mxu0 %v1289
    %1330 = vmatpush.bf16.msra.mxu0 %v1288
    %1331 = vmatpush.bf16.msra.mxu0 %v1287
    %1332 = vmatmul.bf16.gmra.mxu0 %v1178
    %v1333 = vpop.f32.mrf.mxu0
    %v1334 = vadd.f32 %v1321, %v1333
    %v1335 = vpop.f32.mrf.mxu0
    %1336 = vdwg.mxu0
    %v1337 = vadd.f32 %v1334, %v115
    %1338 = vst [vmem:[%s15] sm:$0xff] %v1337
    %1339 = vst [vmem:[#allocation2] sm:$0xff] %v688
    %1340 = vst [vmem:[#allocation2 + $0x8] sm:$0xff] %v690
    %1341 = vst [vmem:[#allocation2 + $0x10] sm:$0xff] %v706
    %1342 = vst [vmem:[#allocation2 + $0x18] sm:$0xff] %v658
    // Predicated region
    $region78: #{slstm_forward_seq.1} parent=1 // pred_check
      %p1343 = pneg %p99
    $region79: #{slstm_forward_seq.1} parent=1 // pred_check_branch
      %1345 = sbr.rel (%p1343) target = $region81
    $region80: #{slstm_forward_seq.1} parent=1 // pred_region
      %v1346 = vld [vmem:[#allocation2] sm:$0xff]
      %v1347 = vld [vmem:[#allocation2 + $0x8] sm:$0xff]
      %v1348 = vld [vmem:[#allocation2 + $0x10] sm:$0xff]
      %v1349 = vld [vmem:[#allocation2 + $0x18] sm:$0xff]
      %1350 = vst [vmem:[%s16] sm:$0xff] %v1346
      %1351 = vst [vmem:[%s16 + $0x8] sm:$0xff] %v1347
      %1352 = vst [vmem:[%s16 + $0x10] sm:$0xff] %v1348
      %1353 = vst [vmem:[%s16 + $0x18] sm:$0xff] %v1349
    $region81: #{slstm_forward_seq.1} parent=1 // pred_fallthru
      _
    // Predicated region
    $region82: #{slstm_forward_seq.1} parent=1 // pred_check
      _
    $region83: #{slstm_forward_seq.1} parent=1 // pred_check_branch
      %1355 = sbr.rel (0) target = $region85
    $region84: #{slstm_forward_seq.1} parent=1 // pred_region
      _
    $region85: #{slstm_forward_seq.1} parent=1 // pred_fallthru
      _
    // Predicated region
    $region86: #{slstm_forward_seq.1} parent=1 // pred_check
      _
    $region87: #{slstm_forward_seq.1} parent=1 // pred_check_branch
      %1357 = sbr.rel (0) target = $region89
    $region88: #{slstm_forward_seq.1} parent=1 // pred_region
      _
    $region89: #{slstm_forward_seq.1} parent=1 // pred_fallthru
      _
    // Predicated region
    $region90: #{slstm_forward_seq.1} parent=1 // pred_check
      _
    $region91: #{slstm_forward_seq.1} parent=1 // pred_check_branch
      %1359 = sbr.rel (0) target = $region93
    $region92: #{slstm_forward_seq.1} parent=1 // pred_region
      _
    $region93: #{slstm_forward_seq.1} parent=1 // pred_fallthru
      _
    // Predicated region
    $region94: #{slstm_forward_seq.1} parent=1 // pred_check
      _
    $region95: #{slstm_forward_seq.1} parent=1 // pred_check_branch
      %1361 = sbr.rel (0) target = $region97
    $region96: #{slstm_forward_seq.1} parent=1 // pred_region
      _
    $region97: #{slstm_forward_seq.1} parent=1 // pred_fallthru
      _
    %1362 = vsyncpa [#allocation4], 1
    %1363 = vsyncpa [#allocation6], 1

</llo_original>
